<compile_context>
chip_gen: v5e
topology: v5e:2x2
jax: 0.10.0
libtpu: 0.0.40
codegen_flags: <defaults>
</compile_context>

<pallas_src>
import functools

import jax
import jax.numpy as jnp
import numpy as np
from jax.experimental import pallas as pl

# ---- constants (stand-ins for the module's `constants`) ----
VOCAB_SIZE = 64
EMBED_DIMENSION = 32
EMBED_MAX_NORM = 1.0
PADDING_IDX = 0
LSTM_HIDDEN_SIZE = 32
LSTM_STACK_COUNT = 2
BATCH_SIZE = 2
SEQ_LEN = 8


# ============================================================
# Fused Pallas kernel: L stacked LSTM layers + linear head
# ============================================================
def fused_lstm_kernel(*refs, num_layers):
    L = num_layers
    x_ref = refs[0]                                     # (B, T, E)
    w_ih0_ref, w_hh0_ref, b0_ref = refs[1], refs[2], refs[3]
    wl_refs = refs[4:4 + 2 * (L - 1)]                   # (w_cat, b) per layer>=1
    idx = 4 + 2 * (L - 1)
    h0_ref, c0_ref, linw_ref, linb_ref = refs[idx:idx + 4]
    logits_ref, h_out_ref, c_out_ref = refs[idx + 4:]

    B, T, E = x_ref.shape
    H = h0_ref.shape[-1]
    V = linw_ref.shape[-1]

    w_hh0 = w_hh0_ref[...]                                            # (H, 4H)
    # layers >= 1: fused [x ; h] weight (2H, 4H) and bias (1, 4H)
    w_cat = [None] + [wl_refs[2 * (l - 1)][...] for l in range(1, L)]
    bias = [b0_ref[...]] + [wl_refs[2 * (l - 1) + 1][...] for l in range(1, L)]

    # --- hoisted layer-0 input projection: one (B*T, E) x (E, 4H) matmul ---
    xg0 = jnp.dot(x_ref[...].reshape(B * T, E), w_ih0_ref[...],
                  preferred_element_type=jnp.float32) + bias[0]
    xg0 = xg0.reshape(B, T, 4 * H)

    # recurrent state lives in vregs for the whole (unrolled) loop
    h = [h0_ref[l] for l in range(L)]
    c = [c0_ref[l] for l in range(L)]

    def lstm_cell(pre, c_prev):
        # Fused gate order along 4H axis is [i, f, o, g]:
        # one sigmoid over the 3 lane-contiguous sigmoid gates, one tanh for g.
        sig = jax.nn.sigmoid(pre[:, :3 * H])
        i_g = sig[:, 0 * H:1 * H]
        f_g = sig[:, 1 * H:2 * H]
        o_g = sig[:, 2 * H:3 * H]
        g_g = jnp.tanh(pre[:, 3 * H:4 * H])
        c_new = f_g * c_prev + i_g * g_g
        h_new = o_g * jnp.tanh(c_new)
        return h_new, c_new

    # --- fully unrolled in-kernel time recurrence (T is small & static) ---
    ys = []
    for t in range(T):
        inp = None
        for l in range(L):
            if l == 0:
                # x-projection (and its bias) already hoisted into xg0
                pre = xg0[:, t, :] + jnp.dot(h[0], w_hh0,
                                             preferred_element_type=jnp.float32)
            else:
                # single fused (B, 2H) x (2H, 4H) dot per cell
                xh = jnp.concatenate([inp, h[l]], axis=-1)
                pre = jnp.dot(xh, w_cat[l],
                              preferred_element_type=jnp.float32) + bias[l]
            h[l], c[l] = lstm_cell(pre, c[l])
            inp = h[l]
        ys.append(inp)                                   # top-layer output @ t

    for l in range(L):
        h_out_ref[l] = h[l]
        c_out_ref[l] = c[l]

    # --- fused linear head: one (B*T, H) x (H, V) matmul on live vregs ---
    y = jnp.stack(ys, axis=1)                            # (B, T, H)
    logits = jnp.dot(y.reshape(B * T, H), linw_ref[...],
                     preferred_element_type=jnp.float32) + linb_ref[...]
    logits_ref[...] = logits.reshape(B, T, V)


# ============================================================
# Parameter construction (deterministic, synthetic)
# ============================================================
def _reorder_gates(w):
    """Column reorder along the fused 4H axis: [i,f,g,o] (PyTorch) -> [i,f,o,g]."""
    i, f, g, o = jnp.split(w, 4, axis=-1)
    return jnp.concatenate([i, f, o, g], axis=-1)


def init_params(key):
    p = {}
    keys = jax.random.split(key, 3 + 4 * LSTM_STACK_COUNT)
    ki = iter(keys)

    # Embedding table; emulate nn.Embedding(max_norm=..., padding_idx=...):
    emb = jax.random.normal(next(ki), (VOCAB_SIZE, EMBED_DIMENSION),
                            dtype=jnp.float32) * 0.5
    norms = jnp.linalg.norm(emb, axis=1, keepdims=True)
    emb = emb * jnp.minimum(1.0, EMBED_MAX_NORM / (norms + 1e-7))
    emb = emb.at[PADDING_IDX].set(0.0)
    p["emb"] = emb

    H = LSTM_HIDDEN_SIZE
    stdv = 1.0 / np.sqrt(H)
    p["lstm"] = []
    for layer in range(LSTM_STACK_COUNT):
        din = EMBED_DIMENSION if layer == 0 else H
        # Generate in PyTorch's [i,f,g,o] column order, then permute to the
        # kernel's [i,f,o,g] layout (this is where real nn.LSTM weights would
        # be transposed / reordered if loaded from a checkpoint).
        w_ih = _reorder_gates(jax.random.uniform(
            next(ki), (din, 4 * H), minval=-stdv, maxval=stdv, dtype=jnp.float32))
        w_hh = _reorder_gates(jax.random.uniform(
            next(ki), (H, 4 * H), minval=-stdv, maxval=stdv, dtype=jnp.float32))
        b_ih = _reorder_gates(jax.random.uniform(
            next(ki), (1, 4 * H), minval=-stdv, maxval=stdv, dtype=jnp.float32))
        b_hh = _reorder_gates(jax.random.uniform(
            next(ki), (1, 4 * H), minval=-stdv, maxval=stdv, dtype=jnp.float32))
        b = b_ih + b_hh
        if layer == 0:
            p["lstm"].append((w_ih, w_hh, b))
        else:
            # Fuse along K: pre = [x_t ; h] @ [[w_ih];[w_hh]]  -> (2H, 4H)
            p["lstm"].append((jnp.concatenate([w_ih, w_hh], axis=0), b))

    lstdv = 1.0 / np.sqrt(H)
    p["lin_w"] = jax.random.uniform(next(ki), (H, VOCAB_SIZE),
                                    minval=-lstdv, maxval=lstdv, dtype=jnp.float32)
    p["lin_b"] = jax.random.uniform(next(ki), (1, VOCAB_SIZE),
                                    minval=-lstdv, maxval=lstdv, dtype=jnp.float32)
    return p


# ============================================================
# Forward pass (single fused Pallas call)
# ============================================================
@jax.jit
def forward(inputs, params, h_c_tuple):
    """inputs: (B, T) int32; h_c_tuple: ((L, B, H), (L, B, H)).
    Returns logits (B, T, V) and (h, c) each (L, B, H)."""
    h0, c0 = h_c_tuple
    # Embedding gather (max_norm / padding_idx enforced at init) is plain JAX
    # glue; the hot matmul/recurrence path is entirely inside the Pallas kernel.
    x = params["emb"][inputs]                            # (B, T, E)
    B, T, _ = x.shape
    L, _, H = h0.shape
    V = params["lin_w"].shape[-1]

    w_ih0, w_hh0, b0 = params["lstm"][0]
    flat_w = [w_ih0, w_hh0, b0]
    for layer in range(1, L):
        w_cat, b = params["lstm"][layer]
        flat_w += [w_cat, b]

    logits, h, c = pl.pallas_call(
        functools.partial(fused_lstm_kernel, num_layers=L),
        out_shape=(jax.ShapeDtypeStruct((B, T, V), jnp.float32),
                   jax.ShapeDtypeStruct((L, B, H), jnp.float32),
                   jax.ShapeDtypeStruct((L, B, H), jnp.float32)),
        # single grid-less invocation: default full-array VMEM blocks
    )(x, *flat_w, h0, c0, params["lin_w"], params["lin_b"])
    return logits, (h, c)


# ============================================================
# Pure-JAX reference (same packed-weight layout, for sanity checking)
# ============================================================
def forward_ref(inputs, params, h_c_tuple):
    h0_all, c0_all = h_c_tuple
    x = params["emb"][inputs]
    H = LSTM_HIDDEN_SIZE
    hp = jax.lax.Precision.HIGHEST

    def cell(pre, c_prev):
        i_g = jax.nn.sigmoid(pre[:, 0 * H:1 * H])
        f_g = jax.nn.sigmoid(pre[:, 1 * H:2 * H])
        o_g = jax.nn.sigmoid(pre[:, 2 * H:3 * H])
        g_g = jnp.tanh(pre[:, 3 * H:4 * H])
        c_new = f_g * c_prev + i_g * g_g
        h_new = o_g * jnp.tanh(c_new)
        return h_new, c_new

    hs, cs = [], []
    for layer in range(LSTM_STACK_COUNT):
        if layer == 0:
            w_ih, w_hh, b = params["lstm"][0]

            def step(carry, xt, w_ih=w_ih, w_hh=w_hh, b=b):
                h, c = carry
                pre = (jnp.dot(xt, w_ih, precision=hp)
                       + jnp.dot(h, w_hh, precision=hp) + b)
                h_new, c_new = cell(pre, c)
                return (h_new, c_new), h_new
        else:
            w_cat, b = params["lstm"][layer]

            def step(carry, xt, w_cat=w_cat, b=b):
                h, c = carry
                pre = jnp.dot(jnp.concatenate([xt, h], axis=-1), w_cat,
                              precision=hp) + b
                h_new, c_new = cell(pre, c)
                return (h_new, c_new), h_new

        (h, c), ys = jax.lax.scan(step, (h0_all[layer], c0_all[layer]),
                                  jnp.transpose(x, (1, 0, 2)))
        x = jnp.transpose(ys, (1, 0, 2))
        hs.append(h)
        cs.append(c)
    logits = jnp.dot(x, params["lin_w"], precision=hp) + params["lin_b"][0]
    return logits, (jnp.stack(hs, 0), jnp.stack(cs, 0))


# ============================================================
if __name__ == "__main__":
    key = jax.random.PRNGKey(0)
    pkey, ikey = jax.random.split(key)
    params = init_params(pkey)

    inputs = jax.random.randint(ikey, (BATCH_SIZE, SEQ_LEN), 0, VOCAB_SIZE,
                                dtype=jnp.int32)

    # get_initial_hidden_context()
    h0 = jnp.zeros((LSTM_STACK_COUNT, BATCH_SIZE, LSTM_HIDDEN_SIZE), jnp.float32)
    c0 = jnp.zeros((LSTM_STACK_COUNT, BATCH_SIZE, LSTM_HIDDEN_SIZE), jnp.float32)

    logits, (h, c) = forward(inputs, params, (h0, c0))
    jax.block_until_ready((logits, h, c))

    ref_logits, (rh, rc) = forward_ref(inputs, params, (h0, c0))
    np.testing.assert_allclose(np.asarray(logits), np.asarray(ref_logits),
                               rtol=1e-2, atol=1e-2)
    np.testing.assert_allclose(np.asarray(h), np.asarray(rh), rtol=1e-2, atol=1e-2)
    np.testing.assert_allclose(np.asarray(c), np.asarray(rc), rtol=1e-2, atol=1e-2)

    print("KERNEL_OK")
</pallas_src>

<mosaic_0001>
module attributes {stable_mosaic.version = 11 : i64} {
  func.func @fused_lstm_kernel(%arg0: memref<2x8x32xf32, #tpu.memory_space<vmem>>, %arg1: memref<32x128xf32, #tpu.memory_space<vmem>>, %arg2: memref<32x128xf32, #tpu.memory_space<vmem>>, %arg3: memref<1x128xf32, #tpu.memory_space<vmem>>, %arg4: memref<64x128xf32, #tpu.memory_space<vmem>>, %arg5: memref<1x128xf32, #tpu.memory_space<vmem>>, %arg6: memref<2x2x32xf32, #tpu.memory_space<vmem>>, %arg7: memref<2x2x32xf32, #tpu.memory_space<vmem>>, %arg8: memref<32x64xf32, #tpu.memory_space<vmem>>, %arg9: memref<1x64xf32, #tpu.memory_space<vmem>>, %arg10: memref<2x8x64xf32, #tpu.memory_space<vmem>>, %arg11: memref<2x2x32xf32, #tpu.memory_space<vmem>>, %arg12: memref<2x2x32xf32, #tpu.memory_space<vmem>>) attributes {dimension_semantics = [], scalar_prefetch = 0 : i64, scratch_operands = 0 : i64, tpu.core_type = #tpu.core_type<tc>} {
    %c0 = arith.constant 0 : index
    %c0_0 = arith.constant 0 : index
    %0 = vector.load %arg2[%c0, %c0_0] : memref<32x128xf32, #tpu.memory_space<vmem>>, vector<32x128xf32>
    %c0_1 = arith.constant 0 : index
    %c0_2 = arith.constant 0 : index
    %1 = vector.load %arg4[%c0_1, %c0_2] : memref<64x128xf32, #tpu.memory_space<vmem>>, vector<64x128xf32>
    %c0_3 = arith.constant 0 : index
    %c0_4 = arith.constant 0 : index
    %2 = vector.load %arg3[%c0_3, %c0_4] : memref<1x128xf32, #tpu.memory_space<vmem>>, vector<1x128xf32>
    %c0_5 = arith.constant 0 : index
    %c0_6 = arith.constant 0 : index
    %3 = vector.load %arg5[%c0_5, %c0_6] : memref<1x128xf32, #tpu.memory_space<vmem>>, vector<1x128xf32>
    %c0_7 = arith.constant 0 : index
    %c0_8 = arith.constant 0 : index
    %c0_9 = arith.constant 0 : index
    %4 = vector.load %arg0[%c0_7, %c0_8, %c0_9] : memref<2x8x32xf32, #tpu.memory_space<vmem>>, vector<2x8x32xf32>
    %5 = vector.shape_cast %4 : vector<2x8x32xf32> to vector<16x32xf32>
    %c0_10 = arith.constant 0 : index
    %c0_11 = arith.constant 0 : index
    %6 = vector.load %arg1[%c0_10, %c0_11] : memref<32x128xf32, #tpu.memory_space<vmem>>, vector<32x128xf32>
    %cst = arith.constant dense<0.000000e+00> : vector<16x128xf32>
    %7 = tpu.matmul %5, %6, %cst {dimension_numbers = #tpu.dot_dimension_numbers<[1], [0], [0], [1], [0, 0, 1, 1], [], []>} : vector<16x32xf32>, vector<32x128xf32>, vector<16x128xf32> -> vector<16x128xf32>
    %8 = vector.broadcast %2 : vector<1x128xf32> to vector<16x128xf32>
    %9 = arith.addf %7, %8 : vector<16x128xf32>
    %10 = vector.shape_cast %9 : vector<16x128xf32> to vector<2x8x128xf32>
    %c0_12 = arith.constant 0 : index
    %c0_13 = arith.constant 0 : index
    %c0_14 = arith.constant 0 : index
    %11 = vector.load %arg6[%c0_12, %c0_13, %c0_14] : memref<2x2x32xf32, #tpu.memory_space<vmem>>, vector<1x2x32xf32>
    %12 = vector.shape_cast %11 : vector<1x2x32xf32> to vector<2x32xf32>
    %c1 = arith.constant 1 : index
    %c0_15 = arith.constant 0 : index
    %c0_16 = arith.constant 0 : index
    %13 = vector.load %arg6[%c1, %c0_15, %c0_16] : memref<2x2x32xf32, #tpu.memory_space<vmem>>, vector<1x2x32xf32>
    %14 = vector.shape_cast %13 : vector<1x2x32xf32> to vector<2x32xf32>
    %c0_17 = arith.constant 0 : index
    %c0_18 = arith.constant 0 : index
    %c0_19 = arith.constant 0 : index
    %15 = vector.load %arg7[%c0_17, %c0_18, %c0_19] : memref<2x2x32xf32, #tpu.memory_space<vmem>>, vector<1x2x32xf32>
    %16 = vector.shape_cast %15 : vector<1x2x32xf32> to vector<2x32xf32>
    %c1_20 = arith.constant 1 : index
    %c0_21 = arith.constant 0 : index
    %c0_22 = arith.constant 0 : index
    %17 = vector.load %arg7[%c1_20, %c0_21, %c0_22] : memref<2x2x32xf32, #tpu.memory_space<vmem>>, vector<1x2x32xf32>
    %18 = vector.shape_cast %17 : vector<1x2x32xf32> to vector<2x32xf32>
    %19 = vector.extract_strided_slice %10 {offsets = [0, 0, 0], sizes = [2, 1, 128], strides = [1, 1, 1]} : vector<2x8x128xf32> to vector<2x1x128xf32>
    %20 = vector.shape_cast %19 : vector<2x1x128xf32> to vector<2x128xf32>
    %cst_23 = arith.constant dense<0.000000e+00> : vector<2x128xf32>
    %21 = tpu.matmul %12, %0, %cst_23 {dimension_numbers = #tpu.dot_dimension_numbers<[1], [0], [0], [1], [0, 0, 1, 1], [], []>} : vector<2x32xf32>, vector<32x128xf32>, vector<2x128xf32> -> vector<2x128xf32>
    %22 = arith.addf %20, %21 : vector<2x128xf32>
    %23 = vector.extract_strided_slice %22 {offsets = [0, 0], sizes = [2, 96], strides = [1, 1]} : vector<2x128xf32> to vector<2x96xf32>
    %24 = arith.negf %23 : vector<2x96xf32>
    %25 = math.exp %24 : vector<2x96xf32>
    %cst_24 = arith.constant 1.000000e+00 : f32
    %26 = vector.broadcast %cst_24 : f32 to vector<2x96xf32>
    %27 = arith.addf %26, %25 : vector<2x96xf32>
    %28 = arith.divf %26, %27 : vector<2x96xf32>
    %29 = vector.extract_strided_slice %28 {offsets = [0, 0], sizes = [2, 32], strides = [1, 1]} : vector<2x96xf32> to vector<2x32xf32>
    %30 = vector.extract_strided_slice %28 {offsets = [0, 32], sizes = [2, 32], strides = [1, 1]} : vector<2x96xf32> to vector<2x32xf32>
    %31 = vector.extract_strided_slice %28 {offsets = [0, 64], sizes = [2, 32], strides = [1, 1]} : vector<2x96xf32> to vector<2x32xf32>
    %32 = vector.extract_strided_slice %22 {offsets = [0, 96], sizes = [2, 32], strides = [1, 1]} : vector<2x128xf32> to vector<2x32xf32>
    %33 = math.tanh %32 : vector<2x32xf32>
    %34 = arith.mulf %30, %16 : vector<2x32xf32>
    %35 = arith.mulf %29, %33 : vector<2x32xf32>
    %36 = arith.addf %34, %35 : vector<2x32xf32>
    %37 = math.tanh %36 : vector<2x32xf32>
    %38 = arith.mulf %31, %37 : vector<2x32xf32>
    %39 = tpu.concatenate %38, %14 in 1 : vector<2x32xf32>, vector<2x32xf32> -> vector<2x64xf32>
    %cst_25 = arith.constant dense<0.000000e+00> : vector<2x128xf32>
    %40 = tpu.matmul %39, %1, %cst_25 {dimension_numbers = #tpu.dot_dimension_numbers<[1], [0], [0], [1], [0, 0, 1, 1], [], []>} : vector<2x64xf32>, vector<64x128xf32>, vector<2x128xf32> -> vector<2x128xf32>
    %41 = vector.broadcast %3 : vector<1x128xf32> to vector<2x128xf32>
    %42 = arith.addf %40, %41 : vector<2x128xf32>
    %43 = vector.extract_strided_slice %42 {offsets = [0, 0], sizes = [2, 96], strides = [1, 1]} : vector<2x128xf32> to vector<2x96xf32>
    %44 = arith.negf %43 : vector<2x96xf32>
    %45 = math.exp %44 : vector<2x96xf32>
    %cst_26 = arith.constant 1.000000e+00 : f32
    %46 = vector.broadcast %cst_26 : f32 to vector<2x96xf32>
    %47 = arith.addf %46, %45 : vector<2x96xf32>
    %48 = arith.divf %46, %47 : vector<2x96xf32>
    %49 = vector.extract_strided_slice %48 {offsets = [0, 0], sizes = [2, 32], strides = [1, 1]} : vector<2x96xf32> to vector<2x32xf32>
    %50 = vector.extract_strided_slice %48 {offsets = [0, 32], sizes = [2, 32], strides = [1, 1]} : vector<2x96xf32> to vector<2x32xf32>
    %51 = vector.extract_strided_slice %48 {offsets = [0, 64], sizes = [2, 32], strides = [1, 1]} : vector<2x96xf32> to vector<2x32xf32>
    %52 = vector.extract_strided_slice %42 {offsets = [0, 96], sizes = [2, 32], strides = [1, 1]} : vector<2x128xf32> to vector<2x32xf32>
    %53 = math.tanh %52 : vector<2x32xf32>
    %54 = arith.mulf %50, %18 : vector<2x32xf32>
    %55 = arith.mulf %49, %53 : vector<2x32xf32>
    %56 = arith.addf %54, %55 : vector<2x32xf32>
    %57 = math.tanh %56 : vector<2x32xf32>
    %58 = arith.mulf %51, %57 : vector<2x32xf32>
    %59 = vector.extract_strided_slice %10 {offsets = [0, 1, 0], sizes = [2, 1, 128], strides = [1, 1, 1]} : vector<2x8x128xf32> to vector<2x1x128xf32>
    %60 = vector.shape_cast %59 : vector<2x1x128xf32> to vector<2x128xf32>
    %cst_27 = arith.constant dense<0.000000e+00> : vector<2x128xf32>
    %61 = tpu.matmul %38, %0, %cst_27 {dimension_numbers = #tpu.dot_dimension_numbers<[1], [0], [0], [1], [0, 0, 1, 1], [], []>} : vector<2x32xf32>, vector<32x128xf32>, vector<2x128xf32> -> vector<2x128xf32>
    %62 = arith.addf %60, %61 : vector<2x128xf32>
    %63 = vector.extract_strided_slice %62 {offsets = [0, 0], sizes = [2, 96], strides = [1, 1]} : vector<2x128xf32> to vector<2x96xf32>
    %64 = arith.negf %63 : vector<2x96xf32>
    %65 = math.exp %64 : vector<2x96xf32>
    %cst_28 = arith.constant 1.000000e+00 : f32
    %66 = vector.broadcast %cst_28 : f32 to vector<2x96xf32>
    %67 = arith.addf %66, %65 : vector<2x96xf32>
    %68 = arith.divf %66, %67 : vector<2x96xf32>
    %69 = vector.extract_strided_slice %68 {offsets = [0, 0], sizes = [2, 32], strides = [1, 1]} : vector<2x96xf32> to vector<2x32xf32>
    %70 = vector.extract_strided_slice %68 {offsets = [0, 32], sizes = [2, 32], strides = [1, 1]} : vector<2x96xf32> to vector<2x32xf32>
    %71 = vector.extract_strided_slice %68 {offsets = [0, 64], sizes = [2, 32], strides = [1, 1]} : vector<2x96xf32> to vector<2x32xf32>
    %72 = vector.extract_strided_slice %62 {offsets = [0, 96], sizes = [2, 32], strides = [1, 1]} : vector<2x128xf32> to vector<2x32xf32>
    %73 = math.tanh %72 : vector<2x32xf32>
    %74 = arith.mulf %70, %36 : vector<2x32xf32>
    %75 = arith.mulf %69, %73 : vector<2x32xf32>
    %76 = arith.addf %74, %75 : vector<2x32xf32>
    %77 = math.tanh %76 : vector<2x32xf32>
    %78 = arith.mulf %71, %77 : vector<2x32xf32>
    %79 = tpu.concatenate %78, %58 in 1 : vector<2x32xf32>, vector<2x32xf32> -> vector<2x64xf32>
    %cst_29 = arith.constant dense<0.000000e+00> : vector<2x128xf32>
    %80 = tpu.matmul %79, %1, %cst_29 {dimension_numbers = #tpu.dot_dimension_numbers<[1], [0], [0], [1], [0, 0, 1, 1], [], []>} : vector<2x64xf32>, vector<64x128xf32>, vector<2x128xf32> -> vector<2x128xf32>
    %81 = vector.broadcast %3 : vector<1x128xf32> to vector<2x128xf32>
    %82 = arith.addf %80, %81 : vector<2x128xf32>
    %83 = vector.extract_strided_slice %82 {offsets = [0, 0], sizes = [2, 96], strides = [1, 1]} : vector<2x128xf32> to vector<2x96xf32>
    %84 = arith.negf %83 : vector<2x96xf32>
    %85 = math.exp %84 : vector<2x96xf32>
    %cst_30 = arith.constant 1.000000e+00 : f32
    %86 = vector.broadcast %cst_30 : f32 to vector<2x96xf32>
    %87 = arith.addf %86, %85 : vector<2x96xf32>
    %88 = arith.divf %86, %87 : vector<2x96xf32>
    %89 = vector.extract_strided_slice %88 {offsets = [0, 0], sizes = [2, 32], strides = [1, 1]} : vector<2x96xf32> to vector<2x32xf32>
    %90 = vector.extract_strided_slice %88 {offsets = [0, 32], sizes = [2, 32], strides = [1, 1]} : vector<2x96xf32> to vector<2x32xf32>
    %91 = vector.extract_strided_slice %88 {offsets = [0, 64], sizes = [2, 32], strides = [1, 1]} : vector<2x96xf32> to vector<2x32xf32>
    %92 = vector.extract_strided_slice %82 {offsets = [0, 96], sizes = [2, 32], strides = [1, 1]} : vector<2x128xf32> to vector<2x32xf32>
    %93 = math.tanh %92 : vector<2x32xf32>
    %94 = arith.mulf %90, %56 : vector<2x32xf32>
    %95 = arith.mulf %89, %93 : vector<2x32xf32>
    %96 = arith.addf %94, %95 : vector<2x32xf32>
    %97 = math.tanh %96 : vector<2x32xf32>
    %98 = arith.mulf %91, %97 : vector<2x32xf32>
    %99 = vector.extract_strided_slice %10 {offsets = [0, 2, 0], sizes = [2, 1, 128], strides = [1, 1, 1]} : vector<2x8x128xf32> to vector<2x1x128xf32>
    %100 = vector.shape_cast %99 : vector<2x1x128xf32> to vector<2x128xf32>
    %cst_31 = arith.constant dense<0.000000e+00> : vector<2x128xf32>
    %101 = tpu.matmul %78, %0, %cst_31 {dimension_numbers = #tpu.dot_dimension_numbers<[1], [0], [0], [1], [0, 0, 1, 1], [], []>} : vector<2x32xf32>, vector<32x128xf32>, vector<2x128xf32> -> vector<2x128xf32>
    %102 = arith.addf %100, %101 : vector<2x128xf32>
    %103 = vector.extract_strided_slice %102 {offsets = [0, 0], sizes = [2, 96], strides = [1, 1]} : vector<2x128xf32> to vector<2x96xf32>
    %104 = arith.negf %103 : vector<2x96xf32>
    %105 = math.exp %104 : vector<2x96xf32>
    %cst_32 = arith.constant 1.000000e+00 : f32
    %106 = vector.broadcast %cst_32 : f32 to vector<2x96xf32>
    %107 = arith.addf %106, %105 : vector<2x96xf32>
    %108 = arith.divf %106, %107 : vector<2x96xf32>
    %109 = vector.extract_strided_slice %108 {offsets = [0, 0], sizes = [2, 32], strides = [1, 1]} : vector<2x96xf32> to vector<2x32xf32>
    %110 = vector.extract_strided_slice %108 {offsets = [0, 32], sizes = [2, 32], strides = [1, 1]} : vector<2x96xf32> to vector<2x32xf32>
    %111 = vector.extract_strided_slice %108 {offsets = [0, 64], sizes = [2, 32], strides = [1, 1]} : vector<2x96xf32> to vector<2x32xf32>
    %112 = vector.extract_strided_slice %102 {offsets = [0, 96], sizes = [2, 32], strides = [1, 1]} : vector<2x128xf32> to vector<2x32xf32>
    %113 = math.tanh %112 : vector<2x32xf32>
    %114 = arith.mulf %110, %76 : vector<2x32xf32>
    %115 = arith.mulf %109, %113 : vector<2x32xf32>
    %116 = arith.addf %114, %115 : vector<2x32xf32>
    %117 = math.tanh %116 : vector<2x32xf32>
    %118 = arith.mulf %111, %117 : vector<2x32xf32>
    %119 = tpu.concatenate %118, %98 in 1 : vector<2x32xf32>, vector<2x32xf32> -> vector<2x64xf32>
    %cst_33 = arith.constant dense<0.000000e+00> : vector<2x128xf32>
    %120 = tpu.matmul %119, %1, %cst_33 {dimension_numbers = #tpu.dot_dimension_numbers<[1], [0], [0], [1], [0, 0, 1, 1], [], []>} : vector<2x64xf32>, vector<64x128xf32>, vector<2x128xf32> -> vector<2x128xf32>
    %121 = vector.broadcast %3 : vector<1x128xf32> to vector<2x128xf32>
    %122 = arith.addf %120, %121 : vector<2x128xf32>
    %123 = vector.extract_strided_slice %122 {offsets = [0, 0], sizes = [2, 96], strides = [1, 1]} : vector<2x128xf32> to vector<2x96xf32>
    %124 = arith.negf %123 : vector<2x96xf32>
    %125 = math.exp %124 : vector<2x96xf32>
    %cst_34 = arith.constant 1.000000e+00 : f32
    %126 = vector.broadcast %cst_34 : f32 to vector<2x96xf32>
    %127 = arith.addf %126, %125 : vector<2x96xf32>
    %128 = arith.divf %126, %127 : vector<2x96xf32>
    %129 = vector.extract_strided_slice %128 {offsets = [0, 0], sizes = [2, 32], strides = [1, 1]} : vector<2x96xf32> to vector<2x32xf32>
    %130 = vector.extract_strided_slice %128 {offsets = [0, 32], sizes = [2, 32], strides = [1, 1]} : vector<2x96xf32> to vector<2x32xf32>
    %131 = vector.extract_strided_slice %128 {offsets = [0, 64], sizes = [2, 32], strides = [1, 1]} : vector<2x96xf32> to vector<2x32xf32>
    %132 = vector.extract_strided_slice %122 {offsets = [0, 96], sizes = [2, 32], strides = [1, 1]} : vector<2x128xf32> to vector<2x32xf32>
    %133 = math.tanh %132 : vector<2x32xf32>
    %134 = arith.mulf %130, %96 : vector<2x32xf32>
    %135 = arith.mulf %129, %133 : vector<2x32xf32>
    %136 = arith.addf %134, %135 : vector<2x32xf32>
    %137 = math.tanh %136 : vector<2x32xf32>
    %138 = arith.mulf %131, %137 : vector<2x32xf32>
    %139 = vector.extract_strided_slice %10 {offsets = [0, 3, 0], sizes = [2, 1, 128], strides = [1, 1, 1]} : vector<2x8x128xf32> to vector<2x1x128xf32>
    %140 = vector.shape_cast %139 : vector<2x1x128xf32> to vector<2x128xf32>
    %cst_35 = arith.constant dense<0.000000e+00> : vector<2x128xf32>
    %141 = tpu.matmul %118, %0, %cst_35 {dimension_numbers = #tpu.dot_dimension_numbers<[1], [0], [0], [1], [0, 0, 1, 1], [], []>} : vector<2x32xf32>, vector<32x128xf32>, vector<2x128xf32> -> vector<2x128xf32>
    %142 = arith.addf %140, %141 : vector<2x128xf32>
    %143 = vector.extract_strided_slice %142 {offsets = [0, 0], sizes = [2, 96], strides = [1, 1]} : vector<2x128xf32> to vector<2x96xf32>
    %144 = arith.negf %143 : vector<2x96xf32>
    %145 = math.exp %144 : vector<2x96xf32>
    %cst_36 = arith.constant 1.000000e+00 : f32
    %146 = vector.broadcast %cst_36 : f32 to vector<2x96xf32>
    %147 = arith.addf %146, %145 : vector<2x96xf32>
    %148 = arith.divf %146, %147 : vector<2x96xf32>
    %149 = vector.extract_strided_slice %148 {offsets = [0, 0], sizes = [2, 32], strides = [1, 1]} : vector<2x96xf32> to vector<2x32xf32>
    %150 = vector.extract_strided_slice %148 {offsets = [0, 32], sizes = [2, 32], strides = [1, 1]} : vector<2x96xf32> to vector<2x32xf32>
    %151 = vector.extract_strided_slice %148 {offsets = [0, 64], sizes = [2, 32], strides = [1, 1]} : vector<2x96xf32> to vector<2x32xf32>
    %152 = vector.extract_strided_slice %142 {offsets = [0, 96], sizes = [2, 32], strides = [1, 1]} : vector<2x128xf32> to vector<2x32xf32>
    %153 = math.tanh %152 : vector<2x32xf32>
    %154 = arith.mulf %150, %116 : vector<2x32xf32>
    %155 = arith.mulf %149, %153 : vector<2x32xf32>
    %156 = arith.addf %154, %155 : vector<2x32xf32>
    %157 = math.tanh %156 : vector<2x32xf32>
    %158 = arith.mulf %151, %157 : vector<2x32xf32>
    %159 = tpu.concatenate %158, %138 in 1 : vector<2x32xf32>, vector<2x32xf32> -> vector<2x64xf32>
    %cst_37 = arith.constant dense<0.000000e+00> : vector<2x128xf32>
    %160 = tpu.matmul %159, %1, %cst_37 {dimension_numbers = #tpu.dot_dimension_numbers<[1], [0], [0], [1], [0, 0, 1, 1], [], []>} : vector<2x64xf32>, vector<64x128xf32>, vector<2x128xf32> -> vector<2x128xf32>
    %161 = vector.broadcast %3 : vector<1x128xf32> to vector<2x128xf32>
    %162 = arith.addf %160, %161 : vector<2x128xf32>
    %163 = vector.extract_strided_slice %162 {offsets = [0, 0], sizes = [2, 96], strides = [1, 1]} : vector<2x128xf32> to vector<2x96xf32>
    %164 = arith.negf %163 : vector<2x96xf32>
    %165 = math.exp %164 : vector<2x96xf32>
    %cst_38 = arith.constant 1.000000e+00 : f32
    %166 = vector.broadcast %cst_38 : f32 to vector<2x96xf32>
    %167 = arith.addf %166, %165 : vector<2x96xf32>
    %168 = arith.divf %166, %167 : vector<2x96xf32>
    %169 = vector.extract_strided_slice %168 {offsets = [0, 0], sizes = [2, 32], strides = [1, 1]} : vector<2x96xf32> to vector<2x32xf32>
    %170 = vector.extract_strided_slice %168 {offsets = [0, 32], sizes = [2, 32], strides = [1, 1]} : vector<2x96xf32> to vector<2x32xf32>
    %171 = vector.extract_strided_slice %168 {offsets = [0, 64], sizes = [2, 32], strides = [1, 1]} : vector<2x96xf32> to vector<2x32xf32>
    %172 = vector.extract_strided_slice %162 {offsets = [0, 96], sizes = [2, 32], strides = [1, 1]} : vector<2x128xf32> to vector<2x32xf32>
    %173 = math.tanh %172 : vector<2x32xf32>
    %174 = arith.mulf %170, %136 : vector<2x32xf32>
    %175 = arith.mulf %169, %173 : vector<2x32xf32>
    %176 = arith.addf %174, %175 : vector<2x32xf32>
    %177 = math.tanh %176 : vector<2x32xf32>
    %178 = arith.mulf %171, %177 : vector<2x32xf32>
    %179 = vector.extract_strided_slice %10 {offsets = [0, 4, 0], sizes = [2, 1, 128], strides = [1, 1, 1]} : vector<2x8x128xf32> to vector<2x1x128xf32>
    %180 = vector.shape_cast %179 : vector<2x1x128xf32> to vector<2x128xf32>
    %cst_39 = arith.constant dense<0.000000e+00> : vector<2x128xf32>
    %181 = tpu.matmul %158, %0, %cst_39 {dimension_numbers = #tpu.dot_dimension_numbers<[1], [0], [0], [1], [0, 0, 1, 1], [], []>} : vector<2x32xf32>, vector<32x128xf32>, vector<2x128xf32> -> vector<2x128xf32>
    %182 = arith.addf %180, %181 : vector<2x128xf32>
    %183 = vector.extract_strided_slice %182 {offsets = [0, 0], sizes = [2, 96], strides = [1, 1]} : vector<2x128xf32> to vector<2x96xf32>
    %184 = arith.negf %183 : vector<2x96xf32>
    %185 = math.exp %184 : vector<2x96xf32>
    %cst_40 = arith.constant 1.000000e+00 : f32
    %186 = vector.broadcast %cst_40 : f32 to vector<2x96xf32>
    %187 = arith.addf %186, %185 : vector<2x96xf32>
    %188 = arith.divf %186, %187 : vector<2x96xf32>
    %189 = vector.extract_strided_slice %188 {offsets = [0, 0], sizes = [2, 32], strides = [1, 1]} : vector<2x96xf32> to vector<2x32xf32>
    %190 = vector.extract_strided_slice %188 {offsets = [0, 32], sizes = [2, 32], strides = [1, 1]} : vector<2x96xf32> to vector<2x32xf32>
    %191 = vector.extract_strided_slice %188 {offsets = [0, 64], sizes = [2, 32], strides = [1, 1]} : vector<2x96xf32> to vector<2x32xf32>
    %192 = vector.extract_strided_slice %182 {offsets = [0, 96], sizes = [2, 32], strides = [1, 1]} : vector<2x128xf32> to vector<2x32xf32>
    %193 = math.tanh %192 : vector<2x32xf32>
    %194 = arith.mulf %190, %156 : vector<2x32xf32>
    %195 = arith.mulf %189, %193 : vector<2x32xf32>
    %196 = arith.addf %194, %195 : vector<2x32xf32>
    %197 = math.tanh %196 : vector<2x32xf32>
    %198 = arith.mulf %191, %197 : vector<2x32xf32>
    %199 = tpu.concatenate %198, %178 in 1 : vector<2x32xf32>, vector<2x32xf32> -> vector<2x64xf32>
    %cst_41 = arith.constant dense<0.000000e+00> : vector<2x128xf32>
    %200 = tpu.matmul %199, %1, %cst_41 {dimension_numbers = #tpu.dot_dimension_numbers<[1], [0], [0], [1], [0, 0, 1, 1], [], []>} : vector<2x64xf32>, vector<64x128xf32>, vector<2x128xf32> -> vector<2x128xf32>
    %201 = vector.broadcast %3 : vector<1x128xf32> to vector<2x128xf32>
    %202 = arith.addf %200, %201 : vector<2x128xf32>
    %203 = vector.extract_strided_slice %202 {offsets = [0, 0], sizes = [2, 96], strides = [1, 1]} : vector<2x128xf32> to vector<2x96xf32>
    %204 = arith.negf %203 : vector<2x96xf32>
    %205 = math.exp %204 : vector<2x96xf32>
    %cst_42 = arith.constant 1.000000e+00 : f32
    %206 = vector.broadcast %cst_42 : f32 to vector<2x96xf32>
    %207 = arith.addf %206, %205 : vector<2x96xf32>
    %208 = arith.divf %206, %207 : vector<2x96xf32>
    %209 = vector.extract_strided_slice %208 {offsets = [0, 0], sizes = [2, 32], strides = [1, 1]} : vector<2x96xf32> to vector<2x32xf32>
    %210 = vector.extract_strided_slice %208 {offsets = [0, 32], sizes = [2, 32], strides = [1, 1]} : vector<2x96xf32> to vector<2x32xf32>
    %211 = vector.extract_strided_slice %208 {offsets = [0, 64], sizes = [2, 32], strides = [1, 1]} : vector<2x96xf32> to vector<2x32xf32>
    %212 = vector.extract_strided_slice %202 {offsets = [0, 96], sizes = [2, 32], strides = [1, 1]} : vector<2x128xf32> to vector<2x32xf32>
    %213 = math.tanh %212 : vector<2x32xf32>
    %214 = arith.mulf %210, %176 : vector<2x32xf32>
    %215 = arith.mulf %209, %213 : vector<2x32xf32>
    %216 = arith.addf %214, %215 : vector<2x32xf32>
    %217 = math.tanh %216 : vector<2x32xf32>
    %218 = arith.mulf %211, %217 : vector<2x32xf32>
    %219 = vector.extract_strided_slice %10 {offsets = [0, 5, 0], sizes = [2, 1, 128], strides = [1, 1, 1]} : vector<2x8x128xf32> to vector<2x1x128xf32>
    %220 = vector.shape_cast %219 : vector<2x1x128xf32> to vector<2x128xf32>
    %cst_43 = arith.constant dense<0.000000e+00> : vector<2x128xf32>
    %221 = tpu.matmul %198, %0, %cst_43 {dimension_numbers = #tpu.dot_dimension_numbers<[1], [0], [0], [1], [0, 0, 1, 1], [], []>} : vector<2x32xf32>, vector<32x128xf32>, vector<2x128xf32> -> vector<2x128xf32>
    %222 = arith.addf %220, %221 : vector<2x128xf32>
    %223 = vector.extract_strided_slice %222 {offsets = [0, 0], sizes = [2, 96], strides = [1, 1]} : vector<2x128xf32> to vector<2x96xf32>
    %224 = arith.negf %223 : vector<2x96xf32>
    %225 = math.exp %224 : vector<2x96xf32>
    %cst_44 = arith.constant 1.000000e+00 : f32
    %226 = vector.broadcast %cst_44 : f32 to vector<2x96xf32>
    %227 = arith.addf %226, %225 : vector<2x96xf32>
    %228 = arith.divf %226, %227 : vector<2x96xf32>
    %229 = vector.extract_strided_slice %228 {offsets = [0, 0], sizes = [2, 32], strides = [1, 1]} : vector<2x96xf32> to vector<2x32xf32>
    %230 = vector.extract_strided_slice %228 {offsets = [0, 32], sizes = [2, 32], strides = [1, 1]} : vector<2x96xf32> to vector<2x32xf32>
    %231 = vector.extract_strided_slice %228 {offsets = [0, 64], sizes = [2, 32], strides = [1, 1]} : vector<2x96xf32> to vector<2x32xf32>
    %232 = vector.extract_strided_slice %222 {offsets = [0, 96], sizes = [2, 32], strides = [1, 1]} : vector<2x128xf32> to vector<2x32xf32>
    %233 = math.tanh %232 : vector<2x32xf32>
    %234 = arith.mulf %230, %196 : vector<2x32xf32>
    %235 = arith.mulf %229, %233 : vector<2x32xf32>
    %236 = arith.addf %234, %235 : vector<2x32xf32>
    %237 = math.tanh %236 : vector<2x32xf32>
    %238 = arith.mulf %231, %237 : vector<2x32xf32>
    %239 = tpu.concatenate %238, %218 in 1 : vector<2x32xf32>, vector<2x32xf32> -> vector<2x64xf32>
    %cst_45 = arith.constant dense<0.000000e+00> : vector<2x128xf32>
    %240 = tpu.matmul %239, %1, %cst_45 {dimension_numbers = #tpu.dot_dimension_numbers<[1], [0], [0], [1], [0, 0, 1, 1], [], []>} : vector<2x64xf32>, vector<64x128xf32>, vector<2x128xf32> -> vector<2x128xf32>
    %241 = vector.broadcast %3 : vector<1x128xf32> to vector<2x128xf32>
    %242 = arith.addf %240, %241 : vector<2x128xf32>
    %243 = vector.extract_strided_slice %242 {offsets = [0, 0], sizes = [2, 96], strides = [1, 1]} : vector<2x128xf32> to vector<2x96xf32>
    %244 = arith.negf %243 : vector<2x96xf32>
    %245 = math.exp %244 : vector<2x96xf32>
    %cst_46 = arith.constant 1.000000e+00 : f32
    %246 = vector.broadcast %cst_46 : f32 to vector<2x96xf32>
    %247 = arith.addf %246, %245 : vector<2x96xf32>
    %248 = arith.divf %246, %247 : vector<2x96xf32>
    %249 = vector.extract_strided_slice %248 {offsets = [0, 0], sizes = [2, 32], strides = [1, 1]} : vector<2x96xf32> to vector<2x32xf32>
    %250 = vector.extract_strided_slice %248 {offsets = [0, 32], sizes = [2, 32], strides = [1, 1]} : vector<2x96xf32> to vector<2x32xf32>
    %251 = vector.extract_strided_slice %248 {offsets = [0, 64], sizes = [2, 32], strides = [1, 1]} : vector<2x96xf32> to vector<2x32xf32>
    %252 = vector.extract_strided_slice %242 {offsets = [0, 96], sizes = [2, 32], strides = [1, 1]} : vector<2x128xf32> to vector<2x32xf32>
    %253 = math.tanh %252 : vector<2x32xf32>
    %254 = arith.mulf %250, %216 : vector<2x32xf32>
    %255 = arith.mulf %249, %253 : vector<2x32xf32>
    %256 = arith.addf %254, %255 : vector<2x32xf32>
    %257 = math.tanh %256 : vector<2x32xf32>
    %258 = arith.mulf %251, %257 : vector<2x32xf32>
    %259 = vector.extract_strided_slice %10 {offsets = [0, 6, 0], sizes = [2, 1, 128], strides = [1, 1, 1]} : vector<2x8x128xf32> to vector<2x1x128xf32>
    %260 = vector.shape_cast %259 : vector<2x1x128xf32> to vector<2x128xf32>
    %cst_47 = arith.constant dense<0.000000e+00> : vector<2x128xf32>
    %261 = tpu.matmul %238, %0, %cst_47 {dimension_numbers = #tpu.dot_dimension_numbers<[1], [0], [0], [1], [0, 0, 1, 1], [], []>} : vector<2x32xf32>, vector<32x128xf32>, vector<2x128xf32> -> vector<2x128xf32>
    %262 = arith.addf %260, %261 : vector<2x128xf32>
    %263 = vector.extract_strided_slice %262 {offsets = [0, 0], sizes = [2, 96], strides = [1, 1]} : vector<2x128xf32> to vector<2x96xf32>
    %264 = arith.negf %263 : vector<2x96xf32>
    %265 = math.exp %264 : vector<2x96xf32>
    %cst_48 = arith.constant 1.000000e+00 : f32
    %266 = vector.broadcast %cst_48 : f32 to vector<2x96xf32>
    %267 = arith.addf %266, %265 : vector<2x96xf32>
    %268 = arith.divf %266, %267 : vector<2x96xf32>
    %269 = vector.extract_strided_slice %268 {offsets = [0, 0], sizes = [2, 32], strides = [1, 1]} : vector<2x96xf32> to vector<2x32xf32>
    %270 = vector.extract_strided_slice %268 {offsets = [0, 32], sizes = [2, 32], strides = [1, 1]} : vector<2x96xf32> to vector<2x32xf32>
    %271 = vector.extract_strided_slice %268 {offsets = [0, 64], sizes = [2, 32], strides = [1, 1]} : vector<2x96xf32> to vector<2x32xf32>
    %272 = vector.extract_strided_slice %262 {offsets = [0, 96], sizes = [2, 32], strides = [1, 1]} : vector<2x128xf32> to vector<2x32xf32>
    %273 = math.tanh %272 : vector<2x32xf32>
    %274 = arith.mulf %270, %236 : vector<2x32xf32>
    %275 = arith.mulf %269, %273 : vector<2x32xf32>
    %276 = arith.addf %274, %275 : vector<2x32xf32>
    %277 = math.tanh %276 : vector<2x32xf32>
    %278 = arith.mulf %271, %277 : vector<2x32xf32>
    %279 = tpu.concatenate %278, %258 in 1 : vector<2x32xf32>, vector<2x32xf32> -> vector<2x64xf32>
    %cst_49 = arith.constant dense<0.000000e+00> : vector<2x128xf32>
    %280 = tpu.matmul %279, %1, %cst_49 {dimension_numbers = #tpu.dot_dimension_numbers<[1], [0], [0], [1], [0, 0, 1, 1], [], []>} : vector<2x64xf32>, vector<64x128xf32>, vector<2x128xf32> -> vector<2x128xf32>
    %281 = vector.broadcast %3 : vector<1x128xf32> to vector<2x128xf32>
    %282 = arith.addf %280, %281 : vector<2x128xf32>
    %283 = vector.extract_strided_slice %282 {offsets = [0, 0], sizes = [2, 96], strides = [1, 1]} : vector<2x128xf32> to vector<2x96xf32>
    %284 = arith.negf %283 : vector<2x96xf32>
    %285 = math.exp %284 : vector<2x96xf32>
    %cst_50 = arith.constant 1.000000e+00 : f32
    %286 = vector.broadcast %cst_50 : f32 to vector<2x96xf32>
    %287 = arith.addf %286, %285 : vector<2x96xf32>
    %288 = arith.divf %286, %287 : vector<2x96xf32>
    %289 = vector.extract_strided_slice %288 {offsets = [0, 0], sizes = [2, 32], strides = [1, 1]} : vector<2x96xf32> to vector<2x32xf32>
    %290 = vector.extract_strided_slice %288 {offsets = [0, 32], sizes = [2, 32], strides = [1, 1]} : vector<2x96xf32> to vector<2x32xf32>
    %291 = vector.extract_strided_slice %288 {offsets = [0, 64], sizes = [2, 32], strides = [1, 1]} : vector<2x96xf32> to vector<2x32xf32>
    %292 = vector.extract_strided_slice %282 {offsets = [0, 96], sizes = [2, 32], strides = [1, 1]} : vector<2x128xf32> to vector<2x32xf32>
    %293 = math.tanh %292 : vector<2x32xf32>
    %294 = arith.mulf %290, %256 : vector<2x32xf32>
    %295 = arith.mulf %289, %293 : vector<2x32xf32>
    %296 = arith.addf %294, %295 : vector<2x32xf32>
    %297 = math.tanh %296 : vector<2x32xf32>
    %298 = arith.mulf %291, %297 : vector<2x32xf32>
    %299 = vector.extract_strided_slice %10 {offsets = [0, 7, 0], sizes = [2, 1, 128], strides = [1, 1, 1]} : vector<2x8x128xf32> to vector<2x1x128xf32>
    %300 = vector.shape_cast %299 : vector<2x1x128xf32> to vector<2x128xf32>
    %cst_51 = arith.constant dense<0.000000e+00> : vector<2x128xf32>
    %301 = tpu.matmul %278, %0, %cst_51 {dimension_numbers = #tpu.dot_dimension_numbers<[1], [0], [0], [1], [0, 0, 1, 1], [], []>} : vector<2x32xf32>, vector<32x128xf32>, vector<2x128xf32> -> vector<2x128xf32>
    %302 = arith.addf %300, %301 : vector<2x128xf32>
    %303 = vector.extract_strided_slice %302 {offsets = [0, 0], sizes = [2, 96], strides = [1, 1]} : vector<2x128xf32> to vector<2x96xf32>
    %304 = arith.negf %303 : vector<2x96xf32>
    %305 = math.exp %304 : vector<2x96xf32>
    %cst_52 = arith.constant 1.000000e+00 : f32
    %306 = vector.broadcast %cst_52 : f32 to vector<2x96xf32>
    %307 = arith.addf %306, %305 : vector<2x96xf32>
    %308 = arith.divf %306, %307 : vector<2x96xf32>
    %309 = vector.extract_strided_slice %308 {offsets = [0, 0], sizes = [2, 32], strides = [1, 1]} : vector<2x96xf32> to vector<2x32xf32>
    %310 = vector.extract_strided_slice %308 {offsets = [0, 32], sizes = [2, 32], strides = [1, 1]} : vector<2x96xf32> to vector<2x32xf32>
    %311 = vector.extract_strided_slice %308 {offsets = [0, 64], sizes = [2, 32], strides = [1, 1]} : vector<2x96xf32> to vector<2x32xf32>
    %312 = vector.extract_strided_slice %302 {offsets = [0, 96], sizes = [2, 32], strides = [1, 1]} : vector<2x128xf32> to vector<2x32xf32>
    %313 = math.tanh %312 : vector<2x32xf32>
    %314 = arith.mulf %310, %276 : vector<2x32xf32>
    %315 = arith.mulf %309, %313 : vector<2x32xf32>
    %316 = arith.addf %314, %315 : vector<2x32xf32>
    %317 = math.tanh %316 : vector<2x32xf32>
    %318 = arith.mulf %311, %317 : vector<2x32xf32>
    %319 = tpu.concatenate %318, %298 in 1 : vector<2x32xf32>, vector<2x32xf32> -> vector<2x64xf32>
    %cst_53 = arith.constant dense<0.000000e+00> : vector<2x128xf32>
    %320 = tpu.matmul %319, %1, %cst_53 {dimension_numbers = #tpu.dot_dimension_numbers<[1], [0], [0], [1], [0, 0, 1, 1], [], []>} : vector<2x64xf32>, vector<64x128xf32>, vector<2x128xf32> -> vector<2x128xf32>
    %321 = vector.broadcast %3 : vector<1x128xf32> to vector<2x128xf32>
    %322 = arith.addf %320, %321 : vector<2x128xf32>
    %323 = vector.extract_strided_slice %322 {offsets = [0, 0], sizes = [2, 96], strides = [1, 1]} : vector<2x128xf32> to vector<2x96xf32>
    %324 = arith.negf %323 : vector<2x96xf32>
    %325 = math.exp %324 : vector<2x96xf32>
    %cst_54 = arith.constant 1.000000e+00 : f32
    %326 = vector.broadcast %cst_54 : f32 to vector<2x96xf32>
    %327 = arith.addf %326, %325 : vector<2x96xf32>
    %328 = arith.divf %326, %327 : vector<2x96xf32>
    %329 = vector.extract_strided_slice %328 {offsets = [0, 0], sizes = [2, 32], strides = [1, 1]} : vector<2x96xf32> to vector<2x32xf32>
    %330 = vector.extract_strided_slice %328 {offsets = [0, 32], sizes = [2, 32], strides = [1, 1]} : vector<2x96xf32> to vector<2x32xf32>
    %331 = vector.extract_strided_slice %328 {offsets = [0, 64], sizes = [2, 32], strides = [1, 1]} : vector<2x96xf32> to vector<2x32xf32>
    %332 = vector.extract_strided_slice %322 {offsets = [0, 96], sizes = [2, 32], strides = [1, 1]} : vector<2x128xf32> to vector<2x32xf32>
    %333 = math.tanh %332 : vector<2x32xf32>
    %334 = arith.mulf %330, %296 : vector<2x32xf32>
    %335 = arith.mulf %329, %333 : vector<2x32xf32>
    %336 = arith.addf %334, %335 : vector<2x32xf32>
    %337 = math.tanh %336 : vector<2x32xf32>
    %338 = arith.mulf %331, %337 : vector<2x32xf32>
    %c0_55 = arith.constant 0 : index
    %c0_56 = arith.constant 0 : index
    %c0_57 = arith.constant 0 : index
    %339 = vector.load %arg11[%c0_55, %c0_56, %c0_57] : memref<2x2x32xf32, #tpu.memory_space<vmem>>, vector<1x2x32xf32>
    %340 = vector.shape_cast %339 : vector<1x2x32xf32> to vector<2x32xf32>
    %341 = vector.shape_cast %318 : vector<2x32xf32> to vector<1x2x32xf32>
    tpu.vector_store %arg11[%c0_55, %c0_56, %c0_57], %341 {strides = array<i32>} : memref<2x2x32xf32, #tpu.memory_space<vmem>>, vector<1x2x32xf32>,
    %c0_58 = arith.constant 0 : index
    %c0_59 = arith.constant 0 : index
    %c0_60 = arith.constant 0 : index
    %342 = vector.load %arg12[%c0_58, %c0_59, %c0_60] : memref<2x2x32xf32, #tpu.memory_space<vmem>>, vector<1x2x32xf32>
    %343 = vector.shape_cast %342 : vector<1x2x32xf32> to vector<2x32xf32>
    %344 = vector.shape_cast %316 : vector<2x32xf32> to vector<1x2x32xf32>
    tpu.vector_store %arg12[%c0_58, %c0_59, %c0_60], %344 {strides = array<i32>} : memref<2x2x32xf32, #tpu.memory_space<vmem>>, vector<1x2x32xf32>,
    %c1_61 = arith.constant 1 : index
    %c0_62 = arith.constant 0 : index
    %c0_63 = arith.constant 0 : index
    %345 = vector.load %arg11[%c1_61, %c0_62, %c0_63] : memref<2x2x32xf32, #tpu.memory_space<vmem>>, vector<1x2x32xf32>
    %346 = vector.shape_cast %345 : vector<1x2x32xf32> to vector<2x32xf32>
    %347 = vector.shape_cast %338 : vector<2x32xf32> to vector<1x2x32xf32>
    tpu.vector_store %arg11[%c1_61, %c0_62, %c0_63], %347 {strides = array<i32>} : memref<2x2x32xf32, #tpu.memory_space<vmem>>, vector<1x2x32xf32>,
    %c1_64 = arith.constant 1 : index
    %c0_65 = arith.constant 0 : index
    %c0_66 = arith.constant 0 : index
    %348 = vector.load %arg12[%c1_64, %c0_65, %c0_66] : memref<2x2x32xf32, #tpu.memory_space<vmem>>, vector<1x2x32xf32>
    %349 = vector.shape_cast %348 : vector<1x2x32xf32> to vector<2x32xf32>
    %350 = vector.shape_cast %336 : vector<2x32xf32> to vector<1x2x32xf32>
    tpu.vector_store %arg12[%c1_64, %c0_65, %c0_66], %350 {strides = array<i32>} : memref<2x2x32xf32, #tpu.memory_space<vmem>>, vector<1x2x32xf32>,
    %351 = vector.shape_cast %58 : vector<2x32xf32> to vector<2x1x32xf32>
    %352 = vector.shape_cast %98 : vector<2x32xf32> to vector<2x1x32xf32>
    %353 = vector.shape_cast %138 : vector<2x32xf32> to vector<2x1x32xf32>
    %354 = vector.shape_cast %178 : vector<2x32xf32> to vector<2x1x32xf32>
    %355 = vector.shape_cast %218 : vector<2x32xf32> to vector<2x1x32xf32>
    %356 = vector.shape_cast %258 : vector<2x32xf32> to vector<2x1x32xf32>
    %357 = vector.shape_cast %298 : vector<2x32xf32> to vector<2x1x32xf32>
    %358 = vector.shape_cast %338 : vector<2x32xf32> to vector<2x1x32xf32>
    %359 = tpu.concatenate %351, %352, %353, %354, %355, %356, %357, %358 in 1 : vector<2x1x32xf32>, vector<2x1x32xf32>, vector<2x1x32xf32>, vector<2x1x32xf32>, vector<2x1x32xf32>, vector<2x1x32xf32>, vector<2x1x32xf32>, vector<2x1x32xf32> -> vector<2x8x32xf32>
    %360 = vector.shape_cast %359 : vector<2x8x32xf32> to vector<16x32xf32>
    %c0_67 = arith.constant 0 : index
    %c0_68 = arith.constant 0 : index
    %361 = vector.load %arg8[%c0_67, %c0_68] : memref<32x64xf32, #tpu.memory_space<vmem>>, vector<32x64xf32>
    %cst_69 = arith.constant dense<0.000000e+00> : vector<16x64xf32>
    %362 = tpu.matmul %360, %361, %cst_69 {dimension_numbers = #tpu.dot_dimension_numbers<[1], [0], [0], [1], [0, 0, 1, 1], [], []>} : vector<16x32xf32>, vector<32x64xf32>, vector<16x64xf32> -> vector<16x64xf32>
    %c0_70 = arith.constant 0 : index
    %c0_71 = arith.constant 0 : index
    %363 = vector.load %arg9[%c0_70, %c0_71] : memref<1x64xf32, #tpu.memory_space<vmem>>, vector<1x64xf32>
    %364 = vector.broadcast %363 : vector<1x64xf32> to vector<16x64xf32>
    %365 = arith.addf %362, %364 : vector<16x64xf32>
    %366 = vector.shape_cast %365 : vector<16x64xf32> to vector<2x8x64xf32>
    %c0_72 = arith.constant 0 : index
    %c0_73 = arith.constant 0 : index
    %c0_74 = arith.constant 0 : index
    %367 = vector.load %arg10[%c0_72, %c0_73, %c0_74] : memref<2x8x64xf32, #tpu.memory_space<vmem>>, vector<2x8x64xf32>
    tpu.vector_store %arg10[%c0_72, %c0_73, %c0_74], %366 {strides = array<i32>} : memref<2x8x64xf32, #tpu.memory_space<vmem>>, vector<2x8x64xf32>,
    return
  }
}

</mosaic_0001>

<llo_original>
// kernel: forward.1
$region0: #{forward.1}
  #allocation0 [shape = 'u32[]', space=smem, size = 0x4, offset = 0x4, fixed_abs, tag = 'smem constant byte address 0x4 - core index']
  #allocation1 [shape = 'u32[72,128]{1,0:T(1,128)}', space=vmem, size = 0x9000, scoped, tag = 'internal scratch']
  %s0 = inlined_call_operand.vmem [shape: f32[2,8,32], index: 0, kind: input, shape index: {}]
  %s1 = inlined_call_operand.vmem [shape: f32[32,128], index: 1, kind: input, shape index: {}]
  %s2 = inlined_call_operand.vmem [shape: f32[32,128], index: 2, kind: input, shape index: {}]
  %s3 = inlined_call_operand.vmem [shape: f32[1,128], index: 3, kind: input, shape index: {}]
  %s4 = inlined_call_operand.vmem [shape: f32[64,128], index: 4, kind: input, shape index: {}]
  %s5 = inlined_call_operand.vmem [shape: f32[1,128], index: 5, kind: input, shape index: {}]
  %s6 = inlined_call_operand.vmem [shape: f32[2,2,32], index: 6, kind: input, shape index: {}]
  %s7 = inlined_call_operand.vmem [shape: f32[2,2,32], index: 7, kind: input, shape index: {}]
  %s8 = inlined_call_operand.vmem [shape: f32[32,64], index: 8, kind: input, shape index: {}]
  %s9 = inlined_call_operand.vmem [shape: f32[1,64], index: 9, kind: input, shape index: {}]
  %s10 = inlined_call_operand.hbm [shape: f32[2,8,64], index: 10, kind: output, shape index: {0}]
  %s11 = inlined_call_operand.hbm [shape: f32[2,2,32], index: 11, kind: output, shape index: {1}]
  %s12 = inlined_call_operand.hbm [shape: f32[2,2,32], index: 12, kind: output, shape index: {2}]
  %13 = xla_tuple %s10, %s11, %s12
  %s14 = sld [smem:[#allocation0]]
  $region66: #{forward.1} parent=0
    _
  %s16 = ssub.s32 1, %s14
  %s17 = scalar_select 0, %s16, %s14
  $region1: #{forward.1} parent=0
    #allocation2 [shape = 'u8[8192]{0}', space=vmem, size = 0x2000, scoped, tag = 'output window, operand 0, single buffered']
    #allocation3 [shape = 's32[1]{0}', space=sflag, size = 0x4, scoped, tag = 'scoped memory for forward.1']
    #allocation4 [shape = 'u8[2048]{0}', space=vmem, size = 0x800, scoped, tag = 'output window, operand 1, single buffered']
    #allocation5 [shape = 's32[1]{0}', space=sflag, size = 0x4, scoped, tag = 'scoped memory for forward.1']
    #allocation6 [shape = 'u8[2048]{0}', space=vmem, size = 0x800, scoped, tag = 'output window, operand 2, single buffered']
    %18 = vsyncpa [#allocation3], 0
    %19 = vsyncpa [#allocation5], 0
    // Predicated region
    $region2: #{forward.1} parent=1 // pred_check
      _
    $region3: #{forward.1} parent=1 // pred_check_branch
      %21 = sbr.rel (0) target = $region5
    $region4: #{forward.1} parent=1 // pred_region
      _
    $region5: #{forward.1} parent=1 // pred_fallthru
      _
    // Predicated region
    $region6: #{forward.1} parent=1 // pred_check
      _
    $region7: #{forward.1} parent=1 // pred_check_branch
      %23 = sbr.rel (0) target = $region9
    $region8: #{forward.1} parent=1 // pred_region
      _
    $region9: #{forward.1} parent=1 // pred_fallthru
      _
    // Predicated region
    $region10: #{forward.1} parent=1 // pred_check
      _
    $region11: #{forward.1} parent=1 // pred_check_branch
      %25 = sbr.rel (0) target = $region13
    $region12: #{forward.1} parent=1 // pred_region
      _
    $region13: #{forward.1} parent=1 // pred_fallthru
      _
    // Predicated region
    $region14: #{forward.1} parent=1 // pred_check
      _
    $region15: #{forward.1} parent=1 // pred_check_branch
      %27 = sbr.rel (0) target = $region17
    $region16: #{forward.1} parent=1 // pred_region
      _
    $region17: #{forward.1} parent=1 // pred_fallthru
      _
    // Predicated region
    $region18: #{forward.1} parent=1 // pred_check
      _
    $region19: #{forward.1} parent=1 // pred_check_branch
      %29 = sbr.rel (0) target = $region21
    $region20: #{forward.1} parent=1 // pred_region
      _
    $region21: #{forward.1} parent=1 // pred_fallthru
      _
    // Predicated region
    $region22: #{forward.1} parent=1 // pred_check
      _
    $region23: #{forward.1} parent=1 // pred_check_branch
      %31 = sbr.rel (0) target = $region25
    $region24: #{forward.1} parent=1 // pred_region
      _
    $region25: #{forward.1} parent=1 // pred_fallthru
      _
    // Predicated region
    $region26: #{forward.1} parent=1 // pred_check
      _
    $region27: #{forward.1} parent=1 // pred_check_branch
      %33 = sbr.rel (0) target = $region29
    $region28: #{forward.1} parent=1 // pred_region
      _
    $region29: #{forward.1} parent=1 // pred_fallthru
      _
    // Predicated region
    $region30: #{forward.1} parent=1 // pred_check
      _
    $region31: #{forward.1} parent=1 // pred_check_branch
      %35 = sbr.rel (0) target = $region33
    $region32: #{forward.1} parent=1 // pred_region
      _
    $region33: #{forward.1} parent=1 // pred_fallthru
      _
    // Predicated region
    $region34: #{forward.1} parent=1 // pred_check
      _
    $region35: #{forward.1} parent=1 // pred_check_branch
      %37 = sbr.rel (0) target = $region37
    $region36: #{forward.1} parent=1 // pred_region
      _
    $region37: #{forward.1} parent=1 // pred_fallthru
      _
    // Predicated region
    $region38: #{forward.1} parent=1 // pred_check
      _
    $region39: #{forward.1} parent=1 // pred_check_branch
      %39 = sbr.rel (0) target = $region41
    $region40: #{forward.1} parent=1 // pred_region
      _
    $region41: #{forward.1} parent=1 // pred_fallthru
      _
    %v40 = vld [vmem:[%s2] sm:$0xff]
    %v41 = vld [vmem:[%s2 + $0x8] sm:$0xff]
    %v42 = vld [vmem:[%s2 + $0x10] sm:$0xff]
    %v43 = vld [vmem:[%s2 + $0x18] sm:$0xff]
    %v44 = vld [vmem:[%s4] sm:$0xff]
    %v45 = vld [vmem:[%s4 + $0x8] sm:$0xff]
    %v46 = vld [vmem:[%s4 + $0x10] sm:$0xff]
    %v47 = vld [vmem:[%s4 + $0x18] sm:$0xff]
    %v48 = vld [vmem:[%s4 + $0x20] sm:$0xff]
    %v49 = vld [vmem:[%s4 + $0x28] sm:$0xff]
    %v50 = vld [vmem:[%s4 + $0x30] sm:$0xff]
    %v51 = vld [vmem:[%s4 + $0x38] sm:$0xff]
    %v52 = vld [vmem:[%s3] sm:$0x1]
    %v53 = vld [vmem:[%s5] sm:$0x1]
    %v54 = vld [vmem:[%s0] sm:$0xff]
    %v55 = vld [vmem:[%s0 + $0x8] sm:$0xff]
    %v56 = vld [vmem:[%s1] sm:$0xff]
    %v57 = vld [vmem:[%s1 + $0x8] sm:$0xff]
    %v58 = vld [vmem:[%s1 + $0x10] sm:$0xff]
    %v59 = vld [vmem:[%s1 + $0x18] sm:$0xff]
    %v61 = vperm.slane %v52, 0
    %vm63 = vcmask 261120
    %v65 = vsel %vm63, %v54, 0
    %v68 = vsel %vm63, %v55, 0
    %70 = vmatpush.msra.mxu0 0.0
    %71 = vmatpush.msra.mxu0 0.0
    %72 = vmatpush.msra.mxu0 0.0
    %73 = vmatpush.msra.mxu0 0.0
    %74 = vmatpush.msra.mxu0 0.0
    %75 = vmatpush.msra.mxu0 0.0
    %76 = vmatpush.msra.mxu0 0.0
    %77 = vmatpush.msra.mxu0 0.0
    %78 = vmatpush.msra.mxu0 0.0
    %79 = vmatpush.msra.mxu0 0.0
    %80 = vmatpush.msra.mxu0 0.0
    %81 = vmatpush.msra.mxu0 0.0
    %82 = vmatpush.msra.mxu0 %v59
    %83 = vmatpush.msra.mxu0 %v58
    %84 = vmatpush.msra.mxu0 %v57
    %85 = vmatpush.msra.mxu0 %v56
    %86 = vmatmul.f32.gmra.mxu0 %v65
    %v87 = vpop.f32.mrf.mxu0
    %v88 = vadd.f32 %v61, %v87
    %89 = vmatmul.f32.gmra.mxu0 %v68
    %v90 = vpop.f32.mrf.mxu0
    %v91 = vadd.f32 %v61, %v90
    %92 = vdwg.mxu0
    %v93 = vld [vmem:[%s6] sm:$0x3]
    %s94 = scalar_lea.vmem %s6, 2
    %v95 = vld [vmem:[%s94] sm:$0x3]
    %v96 = vld [vmem:[%s7] sm:$0x3]
    %s97 = scalar_lea.vmem %s7, 2
    %v98 = vld [vmem:[%s97] sm:$0x3]
    %v100 = vsel %vm63, %v93, 0
    %102 = vmatpush.msra.mxu0 0.0
    %103 = vmatpush.msra.mxu0 0.0
    %104 = vmatpush.msra.mxu0 0.0
    %105 = vmatpush.msra.mxu0 0.0
    %106 = vmatpush.msra.mxu0 0.0
    %107 = vmatpush.msra.mxu0 0.0
    %108 = vmatpush.msra.mxu0 0.0
    %109 = vmatpush.msra.mxu0 0.0
    %110 = vmatpush.msra.mxu0 0.0
    %111 = vmatpush.msra.mxu0 0.0
    %112 = vmatpush.msra.mxu0 0.0
    %113 = vmatpush.msra.mxu0 0.0
    %114 = vmatpush.msra.mxu0 %v43
    %115 = vmatpush.msra.mxu0 %v42
    %116 = vmatpush.msra.mxu0 %v41
    %117 = vmatpush.msra.mxu0 %v40
    %118 = vmatmul.f32.gmra.mxu0 %v100
    %v119 = vpop.f32.mrf.mxu0
    %v120 = vadd.f32 0.0, %v119
    %121 = vdwg.mxu0
    %v123 = vrot.slane %v120, 1
    %v126 = vadd.f32 %v88, %v120
    %v127 = vadd.f32 %v91, %v123
    %v128 = vxor.u32 %v126, 2147483648
    %v129 = vxor.u32 %v127, 2147483648
    %v130 = vmul.f32 %v128, 1.442695
    %v131 = vpow.pop %v130
    %v132 = vmul.f32 %v129, 1.442695
    %v133 = vpow.pop %v132
    %v134 = vadd.f32 %v131, 1.0
    %v135 = vadd.f32 %v133, 1.0
    %v136 = vrcp.pop %v134
    %v137 = vmul.f32 %v134, %v136
    %v138 = vsub.f32 1.0, %v137
    %v139 = vmul.f32 %v136, %v138
    %v140 = vadd.f32 %v136, %v139
    %vm141 = vweird.f32 %v134
    %vm142 = vweird.f32 %v136
    %vm143 = vmor %vm141, %vm142
    %v144 = vsel %vm143, %v136, %v140
    %v145 = vand.u32 2147483647, %v134
    %vm146 = vcmp.eq.f32.partialorder %v145, 8.507059e+37
    %v147 = vand.u32 %v134, 2147483648
    %v148 = vor.u32 1.1754944e-38, %v147
    %v149 = vsel %vm146, %v148, %v144
    %v150 = vmul.f32 1.0, %v149
    %v151 = vrcp.pop %v135
    %v152 = vmul.f32 %v135, %v151
    %v153 = vsub.f32 1.0, %v152
    %v154 = vmul.f32 %v151, %v153
    %v155 = vadd.f32 %v151, %v154
    %vm156 = vweird.f32 %v135
    %vm157 = vweird.f32 %v151
    %vm158 = vmor %vm156, %vm157
    %v159 = vsel %vm158, %v151, %v155
    %v160 = vand.u32 2147483647, %v135
    %vm161 = vcmp.eq.f32.partialorder %v160, 8.507059e+37
    %v162 = vand.u32 %v135, 2147483648
    %v163 = vor.u32 1.1754944e-38, %v162
    %v164 = vsel %vm161, %v163, %v159
    %v165 = vmul.f32 1.0, %v164
    %v166 = vtanh.pop %v126
    %v167 = vtanh.pop %v127
    %v169 = vrot.slane %v96, 1
    %170 = vrot.lane.b32.xlu0 %v96, 32
    %v171 = vpop.permute.xlu0 %170
    %172 = vrot.lane.b32.xlu0 %v169, 32
    %v173 = vpop.permute.xlu0 %172
    %v176 = vmul.f32 %v150, %v171
    %v177 = vmul.f32 %v165, %v173
    %180 = vrot.lane.b32.xlu0 %v166, 32
    %v181 = vpop.permute.xlu0 %180
    %182 = vrot.lane.b32.xlu0 %v167, 32
    %v183 = vpop.permute.xlu0 %182
    %v186 = vmul.f32 %v150, %v181
    %v187 = vmul.f32 %v165, %v183
    %190 = vrot.lane.b32.xlu0 %v186, 32
    %v191 = vpop.permute.xlu0 %190
    %192 = vrot.lane.b32.xlu0 %v187, 32
    %v193 = vpop.permute.xlu0 %192
    %v196 = vadd.f32 %v176, %v191
    %v197 = vadd.f32 %v177, %v193
    %v198 = vtanh.pop %v196
    %v199 = vtanh.pop %v197
    %202 = vrot.lane.b32.xlu0 %v198, 32
    %v203 = vpop.permute.xlu0 %202
    %204 = vrot.lane.b32.xlu0 %v199, 32
    %v205 = vpop.permute.xlu0 %204
    %v208 = vmul.f32 %v150, %v203
    %v209 = vmul.f32 %v165, %v205
    %v212 = vrot.slane %v209, 7
    %vm213 = vcmask 1041409
    %v214 = vsel %vm213, %v212, %v208
    %215 = vrot.lane.b32.xlu0 %v214, 64
    %v216 = vpop.permute.xlu0 %215
    %219 = vrot.lane.b32.xlu0 %v95, 32
    %v220 = vpop.permute.xlu0 %219
    %v222 = vsel %vm63, %v216, %v220
    %v224 = vperm.slane %v53, 0
    %vm226 = vcmask 523264
    %v228 = vsel %vm226, %v222, 0
    %230 = vmatpush.msra.mxu0 0.0
    %231 = vmatpush.msra.mxu0 0.0
    %232 = vmatpush.msra.mxu0 0.0
    %233 = vmatpush.msra.mxu0 0.0
    %234 = vmatpush.msra.mxu0 0.0
    %235 = vmatpush.msra.mxu0 0.0
    %236 = vmatpush.msra.mxu0 0.0
    %237 = vmatpush.msra.mxu0 0.0
    %238 = vmatpush.msra.mxu0 %v51
    %239 = vmatpush.msra.mxu0 %v50
    %240 = vmatpush.msra.mxu0 %v49
    %241 = vmatpush.msra.mxu0 %v48
    %242 = vmatpush.msra.mxu0 %v47
    %243 = vmatpush.msra.mxu0 %v46
    %244 = vmatpush.msra.mxu0 %v45
    %245 = vmatpush.msra.mxu0 %v44
    %246 = vmatmul.f32.gmra.mxu0 %v228
    %v247 = vpop.f32.mrf.mxu0
    %v248 = vadd.f32 %v224, %v247
    %249 = vdwg.mxu0
    %v250 = vxor.u32 %v248, 2147483648
    %v251 = vmul.f32 %v250, 1.442695
    %v252 = vpow.pop %v251
    %v253 = vadd.f32 %v252, 1.0
    %v254 = vrcp.pop %v253
    %v255 = vmul.f32 %v253, %v254
    %v256 = vsub.f32 1.0, %v255
    %v257 = vmul.f32 %v254, %v256
    %v258 = vadd.f32 %v254, %v257
    %vm259 = vweird.f32 %v253
    %vm260 = vweird.f32 %v254
    %vm261 = vmor %vm259, %vm260
    %v262 = vsel %vm261, %v254, %v258
    %v263 = vand.u32 2147483647, %v253
    %vm264 = vcmp.eq.f32.partialorder %v263, 8.507059e+37
    %v265 = vand.u32 %v253, 2147483648
    %v266 = vor.u32 1.1754944e-38, %v265
    %v267 = vsel %vm264, %v266, %v262
    %v268 = vmul.f32 1.0, %v267
    %v269 = vtanh.pop %v248
    %271 = vrot.lane.b32.xlu0 %v98, 32
    %v272 = vpop.permute.xlu0 %271
    %v274 = vmul.f32 %v268, %v272
    %276 = vrot.lane.b32.xlu0 %v269, 32
    %v277 = vpop.permute.xlu0 %276
    %v279 = vmul.f32 %v268, %v277
    %281 = vrot.lane.b32.xlu0 %v279, 32
    %v282 = vpop.permute.xlu0 %281
    %v284 = vadd.f32 %v274, %v282
    %v285 = vtanh.pop %v284
    %287 = vrot.lane.b32.xlu0 %v285, 32
    %v288 = vpop.permute.xlu0 %287
    %v290 = vmul.f32 %v268, %v288
    %v291 = vsel %vm63, %v216, 0
    %293 = vmatpush.msra.mxu0 0.0
    %294 = vmatpush.msra.mxu0 0.0
    %295 = vmatpush.msra.mxu0 0.0
    %296 = vmatpush.msra.mxu0 0.0
    %297 = vmatpush.msra.mxu0 0.0
    %298 = vmatpush.msra.mxu0 0.0
    %299 = vmatpush.msra.mxu0 0.0
    %300 = vmatpush.msra.mxu0 0.0
    %301 = vmatpush.msra.mxu0 0.0
    %302 = vmatpush.msra.mxu0 0.0
    %303 = vmatpush.msra.mxu0 0.0
    %304 = vmatpush.msra.mxu0 0.0
    %305 = vmatpush.msra.mxu0 %v43
    %306 = vmatpush.msra.mxu0 %v42
    %307 = vmatpush.msra.mxu0 %v41
    %308 = vmatpush.msra.mxu0 %v40
    %309 = vmatmul.f32.gmra.mxu0 %v291
    %v310 = vpop.f32.mrf.mxu0
    %v311 = vadd.f32 0.0, %v310
    %312 = vdwg.mxu0
    %v314 = vrot.slane %v311, 7
    %v317 = vadd.f32 %v88, %v314
    %v318 = vadd.f32 %v91, %v311
    %v319 = vxor.u32 %v317, 2147483648
    %v320 = vxor.u32 %v318, 2147483648
    %v321 = vmul.f32 %v319, 1.442695
    %v322 = vpow.pop %v321
    %v323 = vmul.f32 %v320, 1.442695
    %v324 = vpow.pop %v323
    %v325 = vadd.f32 %v322, 1.0
    %v326 = vadd.f32 %v324, 1.0
    %v327 = vrcp.pop %v325
    %v328 = vmul.f32 %v325, %v327
    %v329 = vsub.f32 1.0, %v328
    %v330 = vmul.f32 %v327, %v329
    %v331 = vadd.f32 %v327, %v330
    %vm332 = vweird.f32 %v325
    %vm333 = vweird.f32 %v327
    %vm334 = vmor %vm332, %vm333
    %v335 = vsel %vm334, %v327, %v331
    %v336 = vand.u32 2147483647, %v325
    %vm337 = vcmp.eq.f32.partialorder %v336, 8.507059e+37
    %v338 = vand.u32 %v325, 2147483648
    %v339 = vor.u32 1.1754944e-38, %v338
    %v340 = vsel %vm337, %v339, %v335
    %v341 = vmul.f32 1.0, %v340
    %v342 = vrcp.pop %v326
    %v343 = vmul.f32 %v326, %v342
    %v344 = vsub.f32 1.0, %v343
    %v345 = vmul.f32 %v342, %v344
    %v346 = vadd.f32 %v342, %v345
    %vm347 = vweird.f32 %v326
    %vm348 = vweird.f32 %v342
    %vm349 = vmor %vm347, %vm348
    %v350 = vsel %vm349, %v342, %v346
    %v351 = vand.u32 2147483647, %v326
    %vm352 = vcmp.eq.f32.partialorder %v351, 8.507059e+37
    %v353 = vand.u32 %v326, 2147483648
    %v354 = vor.u32 1.1754944e-38, %v353
    %v355 = vsel %vm352, %v354, %v350
    %v356 = vmul.f32 1.0, %v355
    %v357 = vtanh.pop %v317
    %v358 = vtanh.pop %v318
    %v361 = vrot.slane %v196, 7
    %v362 = vrot.slane %v197, 7
    %v365 = vmul.f32 %v341, %v361
    %v366 = vmul.f32 %v356, %v362
    %369 = vrot.lane.b32.xlu0 %v357, 32
    %v370 = vpop.permute.xlu0 %369
    %371 = vrot.lane.b32.xlu0 %v358, 32
    %v372 = vpop.permute.xlu0 %371
    %v375 = vmul.f32 %v341, %v370
    %v376 = vmul.f32 %v356, %v372
    %379 = vrot.lane.b32.xlu0 %v375, 32
    %v380 = vpop.permute.xlu0 %379
    %381 = vrot.lane.b32.xlu0 %v376, 32
    %v382 = vpop.permute.xlu0 %381
    %v385 = vadd.f32 %v365, %v380
    %v386 = vadd.f32 %v366, %v382
    %v387 = vtanh.pop %v385
    %v388 = vtanh.pop %v386
    %391 = vrot.lane.b32.xlu0 %v387, 32
    %v392 = vpop.permute.xlu0 %391
    %393 = vrot.lane.b32.xlu0 %v388, 32
    %v394 = vpop.permute.xlu0 %393
    %v397 = vmul.f32 %v341, %v392
    %v398 = vmul.f32 %v356, %v394
    %v401 = vrot.slane %v398, 7
    %vm402 = vcmask 1042434
    %v403 = vsel %vm402, %v401, %v397
    %404 = vrot.lane.b32.xlu0 %v403, 64
    %v405 = vpop.permute.xlu0 %404
    %v408 = vrot.slane %v290, 7
    %409 = vrot.lane.b32.xlu0 %v408, 96
    %v410 = vpop.permute.xlu0 %409
    %v412 = vsel %vm63, %v405, %v410
    %v414 = vrot.slane %v412, 1
    %v415 = vsel %vm226, %v414, 0
    %417 = vmatpush.msra.mxu0 0.0
    %418 = vmatpush.msra.mxu0 0.0
    %419 = vmatpush.msra.mxu0 0.0
    %420 = vmatpush.msra.mxu0 0.0
    %421 = vmatpush.msra.mxu0 0.0
    %422 = vmatpush.msra.mxu0 0.0
    %423 = vmatpush.msra.mxu0 0.0
    %424 = vmatpush.msra.mxu0 0.0
    %425 = vmatpush.msra.mxu0 %v51
    %426 = vmatpush.msra.mxu0 %v50
    %427 = vmatpush.msra.mxu0 %v49
    %428 = vmatpush.msra.mxu0 %v48
    %429 = vmatpush.msra.mxu0 %v47
    %430 = vmatpush.msra.mxu0 %v46
    %431 = vmatpush.msra.mxu0 %v45
    %432 = vmatpush.msra.mxu0 %v44
    %433 = vmatmul.f32.gmra.mxu0 %v415
    %v434 = vpop.f32.mrf.mxu0
    %v435 = vadd.f32 %v224, %v434
    %436 = vdwg.mxu0
    %v437 = vxor.u32 %v435, 2147483648
    %v438 = vmul.f32 %v437, 1.442695
    %v439 = vpow.pop %v438
    %v440 = vadd.f32 %v439, 1.0
    %v441 = vrcp.pop %v440
    %v442 = vmul.f32 %v440, %v441
    %v443 = vsub.f32 1.0, %v442
    %v444 = vmul.f32 %v441, %v443
    %v445 = vadd.f32 %v441, %v444
    %vm446 = vweird.f32 %v440
    %vm447 = vweird.f32 %v441
    %vm448 = vmor %vm446, %vm447
    %v449 = vsel %vm448, %v441, %v445
    %v450 = vand.u32 2147483647, %v440
    %vm451 = vcmp.eq.f32.partialorder %v450, 8.507059e+37
    %v452 = vand.u32 %v440, 2147483648
    %v453 = vor.u32 1.1754944e-38, %v452
    %v454 = vsel %vm451, %v453, %v449
    %v455 = vmul.f32 1.0, %v454
    %v456 = vtanh.pop %v435
    %v457 = vmul.f32 %v455, %v284
    %459 = vrot.lane.b32.xlu0 %v456, 32
    %v460 = vpop.permute.xlu0 %459
    %v462 = vmul.f32 %v455, %v460
    %464 = vrot.lane.b32.xlu0 %v462, 32
    %v465 = vpop.permute.xlu0 %464
    %v467 = vadd.f32 %v457, %v465
    %v468 = vtanh.pop %v467
    %470 = vrot.lane.b32.xlu0 %v468, 32
    %v471 = vpop.permute.xlu0 %470
    %v473 = vmul.f32 %v455, %v471
    %v474 = vrot.slane %v397, 1
    %v475 = vsel %vm213, %v398, %v474
    %476 = vrot.lane.b32.xlu0 %v475, 64
    %v477 = vpop.permute.xlu0 %476
    %v478 = vsel %vm63, %v477, 0
    %480 = vmatpush.msra.mxu0 0.0
    %481 = vmatpush.msra.mxu0 0.0
    %482 = vmatpush.msra.mxu0 0.0
    %483 = vmatpush.msra.mxu0 0.0
    %484 = vmatpush.msra.mxu0 0.0
    %485 = vmatpush.msra.mxu0 0.0
    %486 = vmatpush.msra.mxu0 0.0
    %487 = vmatpush.msra.mxu0 0.0
    %488 = vmatpush.msra.mxu0 0.0
    %489 = vmatpush.msra.mxu0 0.0
    %490 = vmatpush.msra.mxu0 0.0
    %491 = vmatpush.msra.mxu0 0.0
    %492 = vmatpush.msra.mxu0 %v43
    %493 = vmatpush.msra.mxu0 %v42
    %494 = vmatpush.msra.mxu0 %v41
    %495 = vmatpush.msra.mxu0 %v40
    %496 = vmatmul.f32.gmra.mxu0 %v478
    %v497 = vpop.f32.mrf.mxu0
    %v498 = vadd.f32 0.0, %v497
    %499 = vdwg.mxu0
    %v501 = vrot.slane %v498, 6
    %v502 = vrot.slane %v498, 7
    %v505 = vadd.f32 %v88, %v501
    %v506 = vadd.f32 %v91, %v502
    %v507 = vxor.u32 %v505, 2147483648
    %v508 = vxor.u32 %v506, 2147483648
    %v509 = vmul.f32 %v507, 1.442695
    %v510 = vpow.pop %v509
    %v511 = vmul.f32 %v508, 1.442695
    %v512 = vpow.pop %v511
    %v513 = vadd.f32 %v510, 1.0
    %v514 = vadd.f32 %v512, 1.0
    %v515 = vrcp.pop %v513
    %v516 = vmul.f32 %v513, %v515
    %v517 = vsub.f32 1.0, %v516
    %v518 = vmul.f32 %v515, %v517
    %v519 = vadd.f32 %v515, %v518
    %vm520 = vweird.f32 %v513
    %vm521 = vweird.f32 %v515
    %vm522 = vmor %vm520, %vm521
    %v523 = vsel %vm522, %v515, %v519
    %v524 = vand.u32 2147483647, %v513
    %vm525 = vcmp.eq.f32.partialorder %v524, 8.507059e+37
    %v526 = vand.u32 %v513, 2147483648
    %v527 = vor.u32 1.1754944e-38, %v526
    %v528 = vsel %vm525, %v527, %v523
    %v529 = vmul.f32 1.0, %v528
    %v530 = vrcp.pop %v514
    %v531 = vmul.f32 %v514, %v530
    %v532 = vsub.f32 1.0, %v531
    %v533 = vmul.f32 %v530, %v532
    %v534 = vadd.f32 %v530, %v533
    %vm535 = vweird.f32 %v514
    %vm536 = vweird.f32 %v530
    %vm537 = vmor %vm535, %vm536
    %v538 = vsel %vm537, %v530, %v534
    %v539 = vand.u32 2147483647, %v514
    %vm540 = vcmp.eq.f32.partialorder %v539, 8.507059e+37
    %v541 = vand.u32 %v514, 2147483648
    %v542 = vor.u32 1.1754944e-38, %v541
    %v543 = vsel %vm540, %v542, %v538
    %v544 = vmul.f32 1.0, %v543
    %v545 = vtanh.pop %v505
    %v546 = vtanh.pop %v506
    %v549 = vrot.slane %v385, 7
    %v550 = vrot.slane %v386, 7
    %v553 = vmul.f32 %v529, %v549
    %v554 = vmul.f32 %v544, %v550
    %557 = vrot.lane.b32.xlu0 %v545, 32
    %v558 = vpop.permute.xlu0 %557
    %559 = vrot.lane.b32.xlu0 %v546, 32
    %v560 = vpop.permute.xlu0 %559
    %v563 = vmul.f32 %v529, %v558
    %v564 = vmul.f32 %v544, %v560
    %567 = vrot.lane.b32.xlu0 %v563, 32
    %v568 = vpop.permute.xlu0 %567
    %569 = vrot.lane.b32.xlu0 %v564, 32
    %v570 = vpop.permute.xlu0 %569
    %v573 = vadd.f32 %v553, %v568
    %v574 = vadd.f32 %v554, %v570
    %v575 = vtanh.pop %v573
    %v576 = vtanh.pop %v574
    %579 = vrot.lane.b32.xlu0 %v575, 32
    %v580 = vpop.permute.xlu0 %579
    %581 = vrot.lane.b32.xlu0 %v576, 32
    %v582 = vpop.permute.xlu0 %581
    %v585 = vmul.f32 %v529, %v580
    %v586 = vmul.f32 %v544, %v582
    %v589 = vrot.slane %v586, 7
    %vm590 = vcmask 1043459
    %v591 = vsel %vm590, %v589, %v585
    %592 = vrot.lane.b32.xlu0 %v591, 64
    %v593 = vpop.permute.xlu0 %592
    %v596 = vrot.slane %v473, 6
    %597 = vrot.lane.b32.xlu0 %v596, 96
    %v598 = vpop.permute.xlu0 %597
    %v600 = vsel %vm63, %v593, %v598
    %v602 = vrot.slane %v600, 2
    %v603 = vsel %vm226, %v602, 0
    %605 = vmatpush.msra.mxu0 0.0
    %606 = vmatpush.msra.mxu0 0.0
    %607 = vmatpush.msra.mxu0 0.0
    %608 = vmatpush.msra.mxu0 0.0
    %609 = vmatpush.msra.mxu0 0.0
    %610 = vmatpush.msra.mxu0 0.0
    %611 = vmatpush.msra.mxu0 0.0
    %612 = vmatpush.msra.mxu0 0.0
    %613 = vmatpush.msra.mxu0 %v51
    %614 = vmatpush.msra.mxu0 %v50
    %615 = vmatpush.msra.mxu0 %v49
    %616 = vmatpush.msra.mxu0 %v48
    %617 = vmatpush.msra.mxu0 %v47
    %618 = vmatpush.msra.mxu0 %v46
    %619 = vmatpush.msra.mxu0 %v45
    %620 = vmatpush.msra.mxu0 %v44
    %621 = vmatmul.f32.gmra.mxu0 %v603
    %v622 = vpop.f32.mrf.mxu0
    %v623 = vadd.f32 %v224, %v622
    %624 = vdwg.mxu0
    %v625 = vxor.u32 %v623, 2147483648
    %v626 = vmul.f32 %v625, 1.442695
    %v627 = vpow.pop %v626
    %v628 = vadd.f32 %v627, 1.0
    %v629 = vrcp.pop %v628
    %v630 = vmul.f32 %v628, %v629
    %v631 = vsub.f32 1.0, %v630
    %v632 = vmul.f32 %v629, %v631
    %v633 = vadd.f32 %v629, %v632
    %vm634 = vweird.f32 %v628
    %vm635 = vweird.f32 %v629
    %vm636 = vmor %vm634, %vm635
    %v637 = vsel %vm636, %v629, %v633
    %v638 = vand.u32 2147483647, %v628
    %vm639 = vcmp.eq.f32.partialorder %v638, 8.507059e+37
    %v640 = vand.u32 %v628, 2147483648
    %v641 = vor.u32 1.1754944e-38, %v640
    %v642 = vsel %vm639, %v641, %v637
    %v643 = vmul.f32 1.0, %v642
    %v644 = vtanh.pop %v623
    %v645 = vmul.f32 %v643, %v467
    %647 = vrot.lane.b32.xlu0 %v644, 32
    %v648 = vpop.permute.xlu0 %647
    %v650 = vmul.f32 %v643, %v648
    %652 = vrot.lane.b32.xlu0 %v650, 32
    %v653 = vpop.permute.xlu0 %652
    %v655 = vadd.f32 %v645, %v653
    %v656 = vtanh.pop %v655
    %658 = vrot.lane.b32.xlu0 %v656, 32
    %v659 = vpop.permute.xlu0 %658
    %v661 = vmul.f32 %v643, %v659
    %v662 = vrot.slane %v585, 2
    %v663 = vrot.slane %v586, 1
    %v664 = vsel %vm213, %v663, %v662
    %665 = vrot.lane.b32.xlu0 %v664, 64
    %v666 = vpop.permute.xlu0 %665
    %v667 = vsel %vm63, %v666, 0
    %669 = vmatpush.msra.mxu0 0.0
    %670 = vmatpush.msra.mxu0 0.0
    %671 = vmatpush.msra.mxu0 0.0
    %672 = vmatpush.msra.mxu0 0.0
    %673 = vmatpush.msra.mxu0 0.0
    %674 = vmatpush.msra.mxu0 0.0
    %675 = vmatpush.msra.mxu0 0.0
    %676 = vmatpush.msra.mxu0 0.0
    %677 = vmatpush.msra.mxu0 0.0
    %678 = vmatpush.msra.mxu0 0.0
    %679 = vmatpush.msra.mxu0 0.0
    %680 = vmatpush.msra.mxu0 0.0
    %681 = vmatpush.msra.mxu0 %v43
    %682 = vmatpush.msra.mxu0 %v42
    %683 = vmatpush.msra.mxu0 %v41
    %684 = vmatpush.msra.mxu0 %v40
    %685 = vmatmul.f32.gmra.mxu0 %v667
    %v686 = vpop.f32.mrf.mxu0
    %v687 = vadd.f32 0.0, %v686
    %688 = vdwg.mxu0
    %v690 = vrot.slane %v687, 5
    %v691 = vrot.slane %v687, 6
    %v694 = vadd.f32 %v88, %v690
    %v695 = vadd.f32 %v91, %v691
    %v696 = vxor.u32 %v694, 2147483648
    %v697 = vxor.u32 %v695, 2147483648
    %v698 = vmul.f32 %v696, 1.442695
    %v699 = vpow.pop %v698
    %v700 = vmul.f32 %v697, 1.442695
    %v701 = vpow.pop %v700
    %v702 = vadd.f32 %v699, 1.0
    %v703 = vadd.f32 %v701, 1.0
    %v704 = vrcp.pop %v702
    %v705 = vmul.f32 %v702, %v704
    %v706 = vsub.f32 1.0, %v705
    %v707 = vmul.f32 %v704, %v706
    %v708 = vadd.f32 %v704, %v707
    %vm709 = vweird.f32 %v702
    %vm710 = vweird.f32 %v704
    %vm711 = vmor %vm709, %vm710
    %v712 = vsel %vm711, %v704, %v708
    %v713 = vand.u32 2147483647, %v702
    %vm714 = vcmp.eq.f32.partialorder %v713, 8.507059e+37
    %v715 = vand.u32 %v702, 2147483648
    %v716 = vor.u32 1.1754944e-38, %v715
    %v717 = vsel %vm714, %v716, %v712
    %v718 = vmul.f32 1.0, %v717
    %v719 = vrcp.pop %v703
    %v720 = vmul.f32 %v703, %v719
    %v721 = vsub.f32 1.0, %v720
    %v722 = vmul.f32 %v719, %v721
    %v723 = vadd.f32 %v719, %v722
    %vm724 = vweird.f32 %v703
    %vm725 = vweird.f32 %v719
    %vm726 = vmor %vm724, %vm725
    %v727 = vsel %vm726, %v719, %v723
    %v728 = vand.u32 2147483647, %v703
    %vm729 = vcmp.eq.f32.partialorder %v728, 8.507059e+37
    %v730 = vand.u32 %v703, 2147483648
    %v731 = vor.u32 1.1754944e-38, %v730
    %v732 = vsel %vm729, %v731, %v727
    %v733 = vmul.f32 1.0, %v732
    %v734 = vtanh.pop %v694
    %v735 = vtanh.pop %v695
    %v738 = vrot.slane %v573, 7
    %v739 = vrot.slane %v574, 7
    %v742 = vmul.f32 %v718, %v738
    %v743 = vmul.f32 %v733, %v739
    %746 = vrot.lane.b32.xlu0 %v734, 32
    %v747 = vpop.permute.xlu0 %746
    %748 = vrot.lane.b32.xlu0 %v735, 32
    %v749 = vpop.permute.xlu0 %748
    %v752 = vmul.f32 %v718, %v747
    %v753 = vmul.f32 %v733, %v749
    %756 = vrot.lane.b32.xlu0 %v752, 32
    %v757 = vpop.permute.xlu0 %756
    %758 = vrot.lane.b32.xlu0 %v753, 32
    %v759 = vpop.permute.xlu0 %758
    %v762 = vadd.f32 %v742, %v757
    %v763 = vadd.f32 %v743, %v759
    %v764 = vtanh.pop %v762
    %v765 = vtanh.pop %v763
    %768 = vrot.lane.b32.xlu0 %v764, 32
    %v769 = vpop.permute.xlu0 %768
    %770 = vrot.lane.b32.xlu0 %v765, 32
    %v771 = vpop.permute.xlu0 %770
    %v774 = vmul.f32 %v718, %v769
    %v775 = vmul.f32 %v733, %v771
    %v778 = vrot.slane %v775, 7
    %vm779 = vcmask 1044484
    %v780 = vsel %vm779, %v778, %v774
    %781 = vrot.lane.b32.xlu0 %v780, 64
    %v782 = vpop.permute.xlu0 %781
    %v785 = vrot.slane %v661, 5
    %786 = vrot.lane.b32.xlu0 %v785, 96
    %v787 = vpop.permute.xlu0 %786
    %v789 = vsel %vm63, %v782, %v787
    %v791 = vrot.slane %v789, 3
    %v792 = vsel %vm226, %v791, 0
    %794 = vmatpush.msra.mxu0 0.0
    %795 = vmatpush.msra.mxu0 0.0
    %796 = vmatpush.msra.mxu0 0.0
    %797 = vmatpush.msra.mxu0 0.0
    %798 = vmatpush.msra.mxu0 0.0
    %799 = vmatpush.msra.mxu0 0.0
    %800 = vmatpush.msra.mxu0 0.0
    %801 = vmatpush.msra.mxu0 0.0
    %802 = vmatpush.msra.mxu0 %v51
    %803 = vmatpush.msra.mxu0 %v50
    %804 = vmatpush.msra.mxu0 %v49
    %805 = vmatpush.msra.mxu0 %v48
    %806 = vmatpush.msra.mxu0 %v47
    %807 = vmatpush.msra.mxu0 %v46
    %808 = vmatpush.msra.mxu0 %v45
    %809 = vmatpush.msra.mxu0 %v44
    %810 = vmatmul.f32.gmra.mxu0 %v792
    %v811 = vpop.f32.mrf.mxu0
    %v812 = vadd.f32 %v224, %v811
    %813 = vdwg.mxu0
    %v814 = vxor.u32 %v812, 2147483648
    %v815 = vmul.f32 %v814, 1.442695
    %v816 = vpow.pop %v815
    %v817 = vadd.f32 %v816, 1.0
    %v818 = vrcp.pop %v817
    %v819 = vmul.f32 %v817, %v818
    %v820 = vsub.f32 1.0, %v819
    %v821 = vmul.f32 %v818, %v820
    %v822 = vadd.f32 %v818, %v821
    %vm823 = vweird.f32 %v817
    %vm824 = vweird.f32 %v818
    %vm825 = vmor %vm823, %vm824
    %v826 = vsel %vm825, %v818, %v822
    %v827 = vand.u32 2147483647, %v817
    %vm828 = vcmp.eq.f32.partialorder %v827, 8.507059e+37
    %v829 = vand.u32 %v817, 2147483648
    %v830 = vor.u32 1.1754944e-38, %v829
    %v831 = vsel %vm828, %v830, %v826
    %v832 = vmul.f32 1.0, %v831
    %v833 = vtanh.pop %v812
    %v834 = vmul.f32 %v832, %v655
    %836 = vrot.lane.b32.xlu0 %v833, 32
    %v837 = vpop.permute.xlu0 %836
    %v839 = vmul.f32 %v832, %v837
    %841 = vrot.lane.b32.xlu0 %v839, 32
    %v842 = vpop.permute.xlu0 %841
    %v844 = vadd.f32 %v834, %v842
    %v845 = vtanh.pop %v844
    %847 = vrot.lane.b32.xlu0 %v845, 32
    %v848 = vpop.permute.xlu0 %847
    %v850 = vmul.f32 %v832, %v848
    %v851 = vrot.slane %v774, 3
    %v852 = vrot.slane %v775, 2
    %v853 = vsel %vm213, %v852, %v851
    %854 = vrot.lane.b32.xlu0 %v853, 64
    %v855 = vpop.permute.xlu0 %854
    %v856 = vsel %vm63, %v855, 0
    %858 = vmatpush.msra.mxu0 0.0
    %859 = vmatpush.msra.mxu0 0.0
    %860 = vmatpush.msra.mxu0 0.0
    %861 = vmatpush.msra.mxu0 0.0
    %862 = vmatpush.msra.mxu0 0.0
    %863 = vmatpush.msra.mxu0 0.0
    %864 = vmatpush.msra.mxu0 0.0
    %865 = vmatpush.msra.mxu0 0.0
    %866 = vmatpush.msra.mxu0 0.0
    %867 = vmatpush.msra.mxu0 0.0
    %868 = vmatpush.msra.mxu0 0.0
    %869 = vmatpush.msra.mxu0 0.0
    %870 = vmatpush.msra.mxu0 %v43
    %871 = vmatpush.msra.mxu0 %v42
    %872 = vmatpush.msra.mxu0 %v41
    %873 = vmatpush.msra.mxu0 %v40
    %874 = vmatmul.f32.gmra.mxu0 %v856
    %v875 = vpop.f32.mrf.mxu0
    %v876 = vadd.f32 0.0, %v875
    %877 = vdwg.mxu0
    %v879 = vrot.slane %v876, 4
    %v880 = vrot.slane %v876, 5
    %v883 = vadd.f32 %v88, %v879
    %v884 = vadd.f32 %v91, %v880
    %v885 = vxor.u32 %v883, 2147483648
    %v886 = vxor.u32 %v884, 2147483648
    %v887 = vmul.f32 %v885, 1.442695
    %v888 = vpow.pop %v887
    %v889 = vmul.f32 %v886, 1.442695
    %v890 = vpow.pop %v889
    %v891 = vadd.f32 %v888, 1.0
    %v892 = vadd.f32 %v890, 1.0
    %v893 = vrcp.pop %v891
    %v894 = vmul.f32 %v891, %v893
    %v895 = vsub.f32 1.0, %v894
    %v896 = vmul.f32 %v893, %v895
    %v897 = vadd.f32 %v893, %v896
    %vm898 = vweird.f32 %v891
    %vm899 = vweird.f32 %v893
    %vm900 = vmor %vm898, %vm899
    %v901 = vsel %vm900, %v893, %v897
    %v902 = vand.u32 2147483647, %v891
    %vm903 = vcmp.eq.f32.partialorder %v902, 8.507059e+37
    %v904 = vand.u32 %v891, 2147483648
    %v905 = vor.u32 1.1754944e-38, %v904
    %v906 = vsel %vm903, %v905, %v901
    %v907 = vmul.f32 1.0, %v906
    %v908 = vrcp.pop %v892
    %v909 = vmul.f32 %v892, %v908
    %v910 = vsub.f32 1.0, %v909
    %v911 = vmul.f32 %v908, %v910
    %v912 = vadd.f32 %v908, %v911
    %vm913 = vweird.f32 %v892
    %vm914 = vweird.f32 %v908
    %vm915 = vmor %vm913, %vm914
    %v916 = vsel %vm915, %v908, %v912
    %v917 = vand.u32 2147483647, %v892
    %vm918 = vcmp.eq.f32.partialorder %v917, 8.507059e+37
    %v919 = vand.u32 %v892, 2147483648
    %v920 = vor.u32 1.1754944e-38, %v919
    %v921 = vsel %vm918, %v920, %v916
    %v922 = vmul.f32 1.0, %v921
    %v923 = vtanh.pop %v883
    %v924 = vtanh.pop %v884
    %v927 = vrot.slane %v762, 7
    %v928 = vrot.slane %v763, 7
    %v931 = vmul.f32 %v907, %v927
    %v932 = vmul.f32 %v922, %v928
    %935 = vrot.lane.b32.xlu0 %v923, 32
    %v936 = vpop.permute.xlu0 %935
    %937 = vrot.lane.b32.xlu0 %v924, 32
    %v938 = vpop.permute.xlu0 %937
    %v941 = vmul.f32 %v907, %v936
    %v942 = vmul.f32 %v922, %v938
    %945 = vrot.lane.b32.xlu0 %v941, 32
    %v946 = vpop.permute.xlu0 %945
    %947 = vrot.lane.b32.xlu0 %v942, 32
    %v948 = vpop.permute.xlu0 %947
    %v951 = vadd.f32 %v931, %v946
    %v952 = vadd.f32 %v932, %v948
    %v953 = vtanh.pop %v951
    %v954 = vtanh.pop %v952
    %957 = vrot.lane.b32.xlu0 %v953, 32
    %v958 = vpop.permute.xlu0 %957
    %959 = vrot.lane.b32.xlu0 %v954, 32
    %v960 = vpop.permute.xlu0 %959
    %v963 = vmul.f32 %v907, %v958
    %v964 = vmul.f32 %v922, %v960
    %v967 = vrot.slane %v964, 7
    %vm968 = vcmask 1045509
    %v969 = vsel %vm968, %v967, %v963
    %970 = vrot.lane.b32.xlu0 %v969, 64
    %v971 = vpop.permute.xlu0 %970
    %v974 = vrot.slane %v850, 4
    %975 = vrot.lane.b32.xlu0 %v974, 96
    %v976 = vpop.permute.xlu0 %975
    %v978 = vsel %vm63, %v971, %v976
    %v980 = vrot.slane %v978, 4
    %v981 = vsel %vm226, %v980, 0
    %983 = vmatpush.msra.mxu0 0.0
    %984 = vmatpush.msra.mxu0 0.0
    %985 = vmatpush.msra.mxu0 0.0
    %986 = vmatpush.msra.mxu0 0.0
    %987 = vmatpush.msra.mxu0 0.0
    %988 = vmatpush.msra.mxu0 0.0
    %989 = vmatpush.msra.mxu0 0.0
    %990 = vmatpush.msra.mxu0 0.0
    %991 = vmatpush.msra.mxu0 %v51
    %992 = vmatpush.msra.mxu0 %v50
    %993 = vmatpush.msra.mxu0 %v49
    %994 = vmatpush.msra.mxu0 %v48
    %995 = vmatpush.msra.mxu0 %v47
    %996 = vmatpush.msra.mxu0 %v46
    %997 = vmatpush.msra.mxu0 %v45
    %998 = vmatpush.msra.mxu0 %v44
    %999 = vmatmul.f32.gmra.mxu0 %v981
    %v1000 = vpop.f32.mrf.mxu0
    %v1001 = vadd.f32 %v224, %v1000
    %1002 = vdwg.mxu0
    %v1003 = vxor.u32 %v1001, 2147483648
    %v1004 = vmul.f32 %v1003, 1.442695
    %v1005 = vpow.pop %v1004
    %v1006 = vadd.f32 %v1005, 1.0
    %v1007 = vrcp.pop %v1006
    %v1008 = vmul.f32 %v1006, %v1007
    %v1009 = vsub.f32 1.0, %v1008
    %v1010 = vmul.f32 %v1007, %v1009
    %v1011 = vadd.f32 %v1007, %v1010
    %vm1012 = vweird.f32 %v1006
    %vm1013 = vweird.f32 %v1007
    %vm1014 = vmor %vm1012, %vm1013
    %v1015 = vsel %vm1014, %v1007, %v1011
    %v1016 = vand.u32 2147483647, %v1006
    %vm1017 = vcmp.eq.f32.partialorder %v1016, 8.507059e+37
    %v1018 = vand.u32 %v1006, 2147483648
    %v1019 = vor.u32 1.1754944e-38, %v1018
    %v1020 = vsel %vm1017, %v1019, %v1015
    %v1021 = vmul.f32 1.0, %v1020
    %v1022 = vtanh.pop %v1001
    %v1023 = vmul.f32 %v1021, %v844
    %1025 = vrot.lane.b32.xlu0 %v1022, 32
    %v1026 = vpop.permute.xlu0 %1025
    %v1028 = vmul.f32 %v1021, %v1026
    %1030 = vrot.lane.b32.xlu0 %v1028, 32
    %v1031 = vpop.permute.xlu0 %1030
    %v1033 = vadd.f32 %v1023, %v1031
    %v1034 = vtanh.pop %v1033
    %1036 = vrot.lane.b32.xlu0 %v1034, 32
    %v1037 = vpop.permute.xlu0 %1036
    %v1039 = vmul.f32 %v1021, %v1037
    %v1040 = vrot.slane %v963, 4
    %v1041 = vrot.slane %v964, 3
    %v1042 = vsel %vm213, %v1041, %v1040
    %1043 = vrot.lane.b32.xlu0 %v1042, 64
    %v1044 = vpop.permute.xlu0 %1043
    %v1045 = vsel %vm63, %v1044, 0
    %1047 = vmatpush.msra.mxu0 0.0
    %1048 = vmatpush.msra.mxu0 0.0
    %1049 = vmatpush.msra.mxu0 0.0
    %1050 = vmatpush.msra.mxu0 0.0
    %1051 = vmatpush.msra.mxu0 0.0
    %1052 = vmatpush.msra.mxu0 0.0
    %1053 = vmatpush.msra.mxu0 0.0
    %1054 = vmatpush.msra.mxu0 0.0
    %1055 = vmatpush.msra.mxu0 0.0
    %1056 = vmatpush.msra.mxu0 0.0
    %1057 = vmatpush.msra.mxu0 0.0
    %1058 = vmatpush.msra.mxu0 0.0
    %1059 = vmatpush.msra.mxu0 %v43
    %1060 = vmatpush.msra.mxu0 %v42
    %1061 = vmatpush.msra.mxu0 %v41
    %1062 = vmatpush.msra.mxu0 %v40
    %1063 = vmatmul.f32.gmra.mxu0 %v1045
    %v1064 = vpop.f32.mrf.mxu0
    %v1065 = vadd.f32 0.0, %v1064
    %1066 = vdwg.mxu0
    %v1068 = vrot.slane %v1065, 3
    %v1069 = vrot.slane %v1065, 4
    %v1072 = vadd.f32 %v88, %v1068
    %v1073 = vadd.f32 %v91, %v1069
    %v1074 = vxor.u32 %v1072, 2147483648
    %v1075 = vxor.u32 %v1073, 2147483648
    %v1076 = vmul.f32 %v1074, 1.442695
    %v1077 = vpow.pop %v1076
    %v1078 = vmul.f32 %v1075, 1.442695
    %v1079 = vpow.pop %v1078
    %v1080 = vadd.f32 %v1077, 1.0
    %v1081 = vadd.f32 %v1079, 1.0
    %v1082 = vrcp.pop %v1080
    %v1083 = vmul.f32 %v1080, %v1082
    %v1084 = vsub.f32 1.0, %v1083
    %v1085 = vmul.f32 %v1082, %v1084
    %v1086 = vadd.f32 %v1082, %v1085
    %vm1087 = vweird.f32 %v1080
    %vm1088 = vweird.f32 %v1082
    %vm1089 = vmor %vm1087, %vm1088
    %v1090 = vsel %vm1089, %v1082, %v1086
    %v1091 = vand.u32 2147483647, %v1080
    %vm1092 = vcmp.eq.f32.partialorder %v1091, 8.507059e+37
    %v1093 = vand.u32 %v1080, 2147483648
    %v1094 = vor.u32 1.1754944e-38, %v1093
    %v1095 = vsel %vm1092, %v1094, %v1090
    %v1096 = vmul.f32 1.0, %v1095
    %v1097 = vrcp.pop %v1081
    %v1098 = vmul.f32 %v1081, %v1097
    %v1099 = vsub.f32 1.0, %v1098
    %v1100 = vmul.f32 %v1097, %v1099
    %v1101 = vadd.f32 %v1097, %v1100
    %vm1102 = vweird.f32 %v1081
    %vm1103 = vweird.f32 %v1097
    %vm1104 = vmor %vm1102, %vm1103
    %v1105 = vsel %vm1104, %v1097, %v1101
    %v1106 = vand.u32 2147483647, %v1081
    %vm1107 = vcmp.eq.f32.partialorder %v1106, 8.507059e+37
    %v1108 = vand.u32 %v1081, 2147483648
    %v1109 = vor.u32 1.1754944e-38, %v1108
    %v1110 = vsel %vm1107, %v1109, %v1105
    %v1111 = vmul.f32 1.0, %v1110
    %v1112 = vtanh.pop %v1072
    %v1113 = vtanh.pop %v1073
    %v1116 = vrot.slane %v951, 7
    %v1117 = vrot.slane %v952, 7
    %v1120 = vmul.f32 %v1096, %v1116
    %v1121 = vmul.f32 %v1111, %v1117
    %1124 = vrot.lane.b32.xlu0 %v1112, 32
    %v1125 = vpop.permute.xlu0 %1124
    %1126 = vrot.lane.b32.xlu0 %v1113, 32
    %v1127 = vpop.permute.xlu0 %1126
    %v1130 = vmul.f32 %v1096, %v1125
    %v1131 = vmul.f32 %v1111, %v1127
    %1134 = vrot.lane.b32.xlu0 %v1130, 32
    %v1135 = vpop.permute.xlu0 %1134
    %1136 = vrot.lane.b32.xlu0 %v1131, 32
    %v1137 = vpop.permute.xlu0 %1136
    %v1140 = vadd.f32 %v1120, %v1135
    %v1141 = vadd.f32 %v1121, %v1137
    %v1142 = vtanh.pop %v1140
    %v1143 = vtanh.pop %v1141
    %1146 = vrot.lane.b32.xlu0 %v1142, 32
    %v1147 = vpop.permute.xlu0 %1146
    %1148 = vrot.lane.b32.xlu0 %v1143, 32
    %v1149 = vpop.permute.xlu0 %1148
    %v1152 = vmul.f32 %v1096, %v1147
    %v1153 = vmul.f32 %v1111, %v1149
    %v1156 = vrot.slane %v1153, 7
    %vm1157 = vcmask 1046534
    %v1158 = vsel %vm1157, %v1156, %v1152
    %1159 = vrot.lane.b32.xlu0 %v1158, 64
    %v1160 = vpop.permute.xlu0 %1159
    %v1163 = vrot.slane %v1039, 3
    %1164 = vrot.lane.b32.xlu0 %v1163, 96
    %v1165 = vpop.permute.xlu0 %1164
    %v1167 = vsel %vm63, %v1160, %v1165
    %v1169 = vrot.slane %v1167, 5
    %v1170 = vsel %vm226, %v1169, 0
    %1172 = vmatpush.msra.mxu0 0.0
    %1173 = vmatpush.msra.mxu0 0.0
    %1174 = vmatpush.msra.mxu0 0.0
    %1175 = vmatpush.msra.mxu0 0.0
    %1176 = vmatpush.msra.mxu0 0.0
    %1177 = vmatpush.msra.mxu0 0.0
    %1178 = vmatpush.msra.mxu0 0.0
    %1179 = vmatpush.msra.mxu0 0.0
    %1180 = vmatpush.msra.mxu0 %v51
    %1181 = vmatpush.msra.mxu0 %v50
    %1182 = vmatpush.msra.mxu0 %v49
    %1183 = vmatpush.msra.mxu0 %v48
    %1184 = vmatpush.msra.mxu0 %v47
    %1185 = vmatpush.msra.mxu0 %v46
    %1186 = vmatpush.msra.mxu0 %v45
    %1187 = vmatpush.msra.mxu0 %v44
    %1188 = vmatmul.f32.gmra.mxu0 %v1170
    %v1189 = vpop.f32.mrf.mxu0
    %v1190 = vadd.f32 %v224, %v1189
    %1191 = vdwg.mxu0
    %v1192 = vxor.u32 %v1190, 2147483648
    %v1193 = vmul.f32 %v1192, 1.442695
    %v1194 = vpow.pop %v1193
    %v1195 = vadd.f32 %v1194, 1.0
    %v1196 = vrcp.pop %v1195
    %v1197 = vmul.f32 %v1195, %v1196
    %v1198 = vsub.f32 1.0, %v1197
    %v1199 = vmul.f32 %v1196, %v1198
    %v1200 = vadd.f32 %v1196, %v1199
    %vm1201 = vweird.f32 %v1195
    %vm1202 = vweird.f32 %v1196
    %vm1203 = vmor %vm1201, %vm1202
    %v1204 = vsel %vm1203, %v1196, %v1200
    %v1205 = vand.u32 2147483647, %v1195
    %vm1206 = vcmp.eq.f32.partialorder %v1205, 8.507059e+37
    %v1207 = vand.u32 %v1195, 2147483648
    %v1208 = vor.u32 1.1754944e-38, %v1207
    %v1209 = vsel %vm1206, %v1208, %v1204
    %v1210 = vmul.f32 1.0, %v1209
    %v1211 = vtanh.pop %v1190
    %v1212 = vmul.f32 %v1210, %v1033
    %1214 = vrot.lane.b32.xlu0 %v1211, 32
    %v1215 = vpop.permute.xlu0 %1214
    %v1217 = vmul.f32 %v1210, %v1215
    %1219 = vrot.lane.b32.xlu0 %v1217, 32
    %v1220 = vpop.permute.xlu0 %1219
    %v1222 = vadd.f32 %v1212, %v1220
    %v1223 = vtanh.pop %v1222
    %1225 = vrot.lane.b32.xlu0 %v1223, 32
    %v1226 = vpop.permute.xlu0 %1225
    %v1228 = vmul.f32 %v1210, %v1226
    %v1229 = vrot.slane %v1152, 5
    %v1230 = vrot.slane %v1153, 4
    %v1231 = vsel %vm213, %v1230, %v1229
    %1232 = vrot.lane.b32.xlu0 %v1231, 64
    %v1233 = vpop.permute.xlu0 %1232
    %v1234 = vsel %vm63, %v1233, 0
    %1236 = vmatpush.msra.mxu0 0.0
    %1237 = vmatpush.msra.mxu0 0.0
    %1238 = vmatpush.msra.mxu0 0.0
    %1239 = vmatpush.msra.mxu0 0.0
    %1240 = vmatpush.msra.mxu0 0.0
    %1241 = vmatpush.msra.mxu0 0.0
    %1242 = vmatpush.msra.mxu0 0.0
    %1243 = vmatpush.msra.mxu0 0.0
    %1244 = vmatpush.msra.mxu0 0.0
    %1245 = vmatpush.msra.mxu0 0.0
    %1246 = vmatpush.msra.mxu0 0.0
    %1247 = vmatpush.msra.mxu0 0.0
    %1248 = vmatpush.msra.mxu0 %v43
    %1249 = vmatpush.msra.mxu0 %v42
    %1250 = vmatpush.msra.mxu0 %v41
    %1251 = vmatpush.msra.mxu0 %v40
    %1252 = vmatmul.f32.gmra.mxu0 %v1234
    %v1253 = vpop.f32.mrf.mxu0
    %v1254 = vadd.f32 0.0, %v1253
    %1255 = vdwg.mxu0
    %v1257 = vrot.slane %v1254, 2
    %v1258 = vrot.slane %v1254, 3
    %v1261 = vadd.f32 %v88, %v1257
    %v1262 = vadd.f32 %v91, %v1258
    %v1263 = vxor.u32 %v1261, 2147483648
    %v1264 = vxor.u32 %v1262, 2147483648
    %v1265 = vmul.f32 %v1263, 1.442695
    %v1266 = vpow.pop %v1265
    %v1267 = vmul.f32 %v1264, 1.442695
    %v1268 = vpow.pop %v1267
    %v1269 = vadd.f32 %v1266, 1.0
    %v1270 = vadd.f32 %v1268, 1.0
    %v1271 = vrcp.pop %v1269
    %v1272 = vmul.f32 %v1269, %v1271
    %v1273 = vsub.f32 1.0, %v1272
    %v1274 = vmul.f32 %v1271, %v1273
    %v1275 = vadd.f32 %v1271, %v1274
    %vm1276 = vweird.f32 %v1269
    %vm1277 = vweird.f32 %v1271
    %vm1278 = vmor %vm1276, %vm1277
    %v1279 = vsel %vm1278, %v1271, %v1275
    %v1280 = vand.u32 2147483647, %v1269
    %vm1281 = vcmp.eq.f32.partialorder %v1280, 8.507059e+37
    %v1282 = vand.u32 %v1269, 2147483648
    %v1283 = vor.u32 1.1754944e-38, %v1282
    %v1284 = vsel %vm1281, %v1283, %v1279
    %v1285 = vmul.f32 1.0, %v1284
    %v1286 = vrcp.pop %v1270
    %v1287 = vmul.f32 %v1270, %v1286
    %v1288 = vsub.f32 1.0, %v1287
    %v1289 = vmul.f32 %v1286, %v1288
    %v1290 = vadd.f32 %v1286, %v1289
    %vm1291 = vweird.f32 %v1270
    %vm1292 = vweird.f32 %v1286
    %vm1293 = vmor %vm1291, %vm1292
    %v1294 = vsel %vm1293, %v1286, %v1290
    %v1295 = vand.u32 2147483647, %v1270
    %vm1296 = vcmp.eq.f32.partialorder %v1295, 8.507059e+37
    %v1297 = vand.u32 %v1270, 2147483648
    %v1298 = vor.u32 1.1754944e-38, %v1297
    %v1299 = vsel %vm1296, %v1298, %v1294
    %v1300 = vmul.f32 1.0, %v1299
    %v1301 = vtanh.pop %v1261
    %v1302 = vtanh.pop %v1262
    %v1305 = vrot.slane %v1140, 7
    %v1306 = vrot.slane %v1141, 7
    %v1309 = vmul.f32 %v1285, %v1305
    %v1310 = vmul.f32 %v1300, %v1306
    %1313 = vrot.lane.b32.xlu0 %v1301, 32
    %v1314 = vpop.permute.xlu0 %1313
    %1315 = vrot.lane.b32.xlu0 %v1302, 32
    %v1316 = vpop.permute.xlu0 %1315
    %v1319 = vmul.f32 %v1285, %v1314
    %v1320 = vmul.f32 %v1300, %v1316
    %1323 = vrot.lane.b32.xlu0 %v1319, 32
    %v1324 = vpop.permute.xlu0 %1323
    %1325 = vrot.lane.b32.xlu0 %v1320, 32
    %v1326 = vpop.permute.xlu0 %1325
    %v1329 = vadd.f32 %v1309, %v1324
    %v1330 = vadd.f32 %v1310, %v1326
    %v1331 = vtanh.pop %v1329
    %v1332 = vtanh.pop %v1330
    %1335 = vrot.lane.b32.xlu0 %v1331, 32
    %v1336 = vpop.permute.xlu0 %1335
    %1337 = vrot.lane.b32.xlu0 %v1332, 32
    %v1338 = vpop.permute.xlu0 %1337
    %v1341 = vmul.f32 %v1285, %v1336
    %v1342 = vmul.f32 %v1300, %v1338
    %v1345 = vrot.slane %v1342, 7
    %vm1346 = vcmask 1047559
    %v1347 = vsel %vm1346, %v1345, %v1341
    %1348 = vrot.lane.b32.xlu0 %v1347, 64
    %v1349 = vpop.permute.xlu0 %1348
    %v1352 = vrot.slane %v1228, 2
    %1353 = vrot.lane.b32.xlu0 %v1352, 96
    %v1354 = vpop.permute.xlu0 %1353
    %v1356 = vsel %vm63, %v1349, %v1354
    %v1358 = vrot.slane %v1356, 6
    %v1359 = vsel %vm226, %v1358, 0
    %1361 = vmatpush.msra.mxu0 0.0
    %1362 = vmatpush.msra.mxu0 0.0
    %1363 = vmatpush.msra.mxu0 0.0
    %1364 = vmatpush.msra.mxu0 0.0
    %1365 = vmatpush.msra.mxu0 0.0
    %1366 = vmatpush.msra.mxu0 0.0
    %1367 = vmatpush.msra.mxu0 0.0
    %1368 = vmatpush.msra.mxu0 0.0
    %1369 = vmatpush.msra.mxu0 %v51
    %1370 = vmatpush.msra.mxu0 %v50
    %1371 = vmatpush.msra.mxu0 %v49
    %1372 = vmatpush.msra.mxu0 %v48
    %1373 = vmatpush.msra.mxu0 %v47
    %1374 = vmatpush.msra.mxu0 %v46
    %1375 = vmatpush.msra.mxu0 %v45
    %1376 = vmatpush.msra.mxu0 %v44
    %1377 = vmatmul.f32.gmra.mxu0 %v1359
    %v1378 = vpop.f32.mrf.mxu0
    %v1379 = vadd.f32 %v224, %v1378
    %1380 = vdwg.mxu0
    %v1381 = vxor.u32 %v1379, 2147483648
    %v1382 = vmul.f32 %v1381, 1.442695
    %v1383 = vpow.pop %v1382
    %v1384 = vadd.f32 %v1383, 1.0
    %v1385 = vrcp.pop %v1384
    %v1386 = vmul.f32 %v1384, %v1385
    %v1387 = vsub.f32 1.0, %v1386
    %v1388 = vmul.f32 %v1385, %v1387
    %v1389 = vadd.f32 %v1385, %v1388
    %vm1390 = vweird.f32 %v1384
    %vm1391 = vweird.f32 %v1385
    %vm1392 = vmor %vm1390, %vm1391
    %v1393 = vsel %vm1392, %v1385, %v1389
    %v1394 = vand.u32 2147483647, %v1384
    %vm1395 = vcmp.eq.f32.partialorder %v1394, 8.507059e+37
    %v1396 = vand.u32 %v1384, 2147483648
    %v1397 = vor.u32 1.1754944e-38, %v1396
    %v1398 = vsel %vm1395, %v1397, %v1393
    %v1399 = vmul.f32 1.0, %v1398
    %v1400 = vtanh.pop %v1379
    %v1401 = vmul.f32 %v1399, %v1222
    %1403 = vrot.lane.b32.xlu0 %v1400, 32
    %v1404 = vpop.permute.xlu0 %1403
    %v1406 = vmul.f32 %v1399, %v1404
    %1408 = vrot.lane.b32.xlu0 %v1406, 32
    %v1409 = vpop.permute.xlu0 %1408
    %v1411 = vadd.f32 %v1401, %v1409
    %v1412 = vtanh.pop %v1411
    %1414 = vrot.lane.b32.xlu0 %v1412, 32
    %v1415 = vpop.permute.xlu0 %1414
    %v1417 = vmul.f32 %v1399, %v1415
    %v1418 = vrot.slane %v1341, 6
    %v1419 = vrot.slane %v1342, 5
    %v1420 = vsel %vm213, %v1419, %v1418
    %1421 = vrot.lane.b32.xlu0 %v1420, 64
    %v1422 = vpop.permute.xlu0 %1421
    %v1423 = vsel %vm63, %v1422, 0
    %1425 = vmatpush.msra.mxu0 0.0
    %1426 = vmatpush.msra.mxu0 0.0
    %1427 = vmatpush.msra.mxu0 0.0
    %1428 = vmatpush.msra.mxu0 0.0
    %1429 = vmatpush.msra.mxu0 0.0
    %1430 = vmatpush.msra.mxu0 0.0
    %1431 = vmatpush.msra.mxu0 0.0
    %1432 = vmatpush.msra.mxu0 0.0
    %1433 = vmatpush.msra.mxu0 0.0
    %1434 = vmatpush.msra.mxu0 0.0
    %1435 = vmatpush.msra.mxu0 0.0
    %1436 = vmatpush.msra.mxu0 0.0
    %1437 = vmatpush.msra.mxu0 %v43
    %1438 = vmatpush.msra.mxu0 %v42
    %1439 = vmatpush.msra.mxu0 %v41
    %1440 = vmatpush.msra.mxu0 %v40
    %1441 = vmatmul.f32.gmra.mxu0 %v1423
    %v1442 = vpop.f32.mrf.mxu0
    %v1443 = vadd.f32 0.0, %v1442
    %1444 = vdwg.mxu0
    %v1446 = vrot.slane %v1443, 1
    %v1447 = vrot.slane %v1443, 2
    %v1450 = vadd.f32 %v88, %v1446
    %v1451 = vadd.f32 %v91, %v1447
    %v1452 = vxor.u32 %v1450, 2147483648
    %v1453 = vxor.u32 %v1451, 2147483648
    %v1454 = vmul.f32 %v1452, 1.442695
    %v1455 = vpow.pop %v1454
    %v1456 = vmul.f32 %v1453, 1.442695
    %v1457 = vpow.pop %v1456
    %v1458 = vadd.f32 %v1455, 1.0
    %v1459 = vadd.f32 %v1457, 1.0
    %v1460 = vrcp.pop %v1458
    %v1461 = vmul.f32 %v1458, %v1460
    %v1462 = vsub.f32 1.0, %v1461
    %v1463 = vmul.f32 %v1460, %v1462
    %v1464 = vadd.f32 %v1460, %v1463
    %vm1465 = vweird.f32 %v1458
    %vm1466 = vweird.f32 %v1460
    %vm1467 = vmor %vm1465, %vm1466
    %v1468 = vsel %vm1467, %v1460, %v1464
    %v1469 = vand.u32 2147483647, %v1458
    %vm1470 = vcmp.eq.f32.partialorder %v1469, 8.507059e+37
    %v1471 = vand.u32 %v1458, 2147483648
    %v1472 = vor.u32 1.1754944e-38, %v1471
    %v1473 = vsel %vm1470, %v1472, %v1468
    %v1474 = vmul.f32 1.0, %v1473
    %v1475 = vrcp.pop %v1459
    %v1476 = vmul.f32 %v1459, %v1475
    %v1477 = vsub.f32 1.0, %v1476
    %v1478 = vmul.f32 %v1475, %v1477
    %v1479 = vadd.f32 %v1475, %v1478
    %vm1480 = vweird.f32 %v1459
    %vm1481 = vweird.f32 %v1475
    %vm1482 = vmor %vm1480, %vm1481
    %v1483 = vsel %vm1482, %v1475, %v1479
    %v1484 = vand.u32 2147483647, %v1459
    %vm1485 = vcmp.eq.f32.partialorder %v1484, 8.507059e+37
    %v1486 = vand.u32 %v1459, 2147483648
    %v1487 = vor.u32 1.1754944e-38, %v1486
    %v1488 = vsel %vm1485, %v1487, %v1483
    %v1489 = vmul.f32 1.0, %v1488
    %v1490 = vtanh.pop %v1450
    %v1491 = vtanh.pop %v1451
    %v1494 = vrot.slane %v1329, 7
    %v1495 = vrot.slane %v1330, 7
    %v1498 = vmul.f32 %v1474, %v1494
    %v1499 = vmul.f32 %v1489, %v1495
    %1502 = vrot.lane.b32.xlu0 %v1490, 32
    %v1503 = vpop.permute.xlu0 %1502
    %1504 = vrot.lane.b32.xlu0 %v1491, 32
    %v1505 = vpop.permute.xlu0 %1504
    %v1508 = vmul.f32 %v1474, %v1503
    %v1509 = vmul.f32 %v1489, %v1505
    %1512 = vrot.lane.b32.xlu0 %v1508, 32
    %v1513 = vpop.permute.xlu0 %1512
    %1514 = vrot.lane.b32.xlu0 %v1509, 32
    %v1515 = vpop.permute.xlu0 %1514
    %v1518 = vadd.f32 %v1498, %v1513
    %v1519 = vadd.f32 %v1499, %v1515
    %v1520 = vtanh.pop %v1518
    %v1521 = vtanh.pop %v1519
    %1524 = vrot.lane.b32.xlu0 %v1520, 32
    %v1525 = vpop.permute.xlu0 %1524
    %1526 = vrot.lane.b32.xlu0 %v1521, 32
    %v1527 = vpop.permute.xlu0 %1526
    %v1530 = vmul.f32 %v1474, %v1525
    %v1531 = vmul.f32 %v1489, %v1527
    %v1534 = vrot.slane %v1531, 7
    %1535 = vrot.lane.b32.xlu0 %v1530, 64
    %v1536 = vpop.permute.xlu0 %1535
    %1537 = vrot.lane.b32.xlu0 %v1534, 64
    %v1538 = vpop.permute.xlu0 %1537
    %v1542 = vrot.slane %v1417, 1
    %1543 = vrot.lane.b32.xlu0 %v1542, 96
    %v1544 = vpop.permute.xlu0 %1543
    %v1546 = vsel %vm63, %v1536, %v1544
    %v1547 = vsel %vm63, %v1538, %v1544
    %vm1550 = vcmask 1040384
    %v1551 = vrot.slane %v1546, 7
    %v1552 = vrot.slane %v1547, 7
    %v1553 = vsel %vm1550, %v1551, %v1552
    %v1554 = vsel %vm226, %v1553, 0
    %1556 = vmatpush.msra.mxu0 0.0
    %1557 = vmatpush.msra.mxu0 0.0
    %1558 = vmatpush.msra.mxu0 0.0
    %1559 = vmatpush.msra.mxu0 0.0
    %1560 = vmatpush.msra.mxu0 0.0
    %1561 = vmatpush.msra.mxu0 0.0
    %1562 = vmatpush.msra.mxu0 0.0
    %1563 = vmatpush.msra.mxu0 0.0
    %1564 = vmatpush.msra.mxu0 %v51
    %1565 = vmatpush.msra.mxu0 %v50
    %1566 = vmatpush.msra.mxu0 %v49
    %1567 = vmatpush.msra.mxu0 %v48
    %1568 = vmatpush.msra.mxu0 %v47
    %1569 = vmatpush.msra.mxu0 %v46
    %1570 = vmatpush.msra.mxu0 %v45
    %1571 = vmatpush.msra.mxu0 %v44
    %1572 = vmatmul.f32.gmra.mxu0 %v1554
    %v1573 = vpop.f32.mrf.mxu0
    %v1574 = vadd.f32 %v224, %v1573
    %1575 = vdwg.mxu0
    %v1576 = vxor.u32 %v1574, 2147483648
    %v1577 = vmul.f32 %v1576, 1.442695
    %v1578 = vpow.pop %v1577
    %v1579 = vadd.f32 %v1578, 1.0
    %v1580 = vrcp.pop %v1579
    %v1581 = vmul.f32 %v1579, %v1580
    %v1582 = vsub.f32 1.0, %v1581
    %v1583 = vmul.f32 %v1580, %v1582
    %v1584 = vadd.f32 %v1580, %v1583
    %vm1585 = vweird.f32 %v1579
    %vm1586 = vweird.f32 %v1580
    %vm1587 = vmor %vm1585, %vm1586
    %v1588 = vsel %vm1587, %v1580, %v1584
    %v1589 = vand.u32 2147483647, %v1579
    %vm1590 = vcmp.eq.f32.partialorder %v1589, 8.507059e+37
    %v1591 = vand.u32 %v1579, 2147483648
    %v1592 = vor.u32 1.1754944e-38, %v1591
    %v1593 = vsel %vm1590, %v1592, %v1588
    %v1594 = vmul.f32 1.0, %v1593
    %v1595 = vtanh.pop %v1574
    %v1596 = vmul.f32 %v1594, %v1411
    %1598 = vrot.lane.b32.xlu0 %v1595, 32
    %v1599 = vpop.permute.xlu0 %1598
    %v1601 = vmul.f32 %v1594, %v1599
    %1603 = vrot.lane.b32.xlu0 %v1601, 32
    %v1604 = vpop.permute.xlu0 %1603
    %v1606 = vadd.f32 %v1596, %v1604
    %v1607 = vtanh.pop %v1606
    %1609 = vrot.lane.b32.xlu0 %v1607, 32
    %v1610 = vpop.permute.xlu0 %1609
    %v1612 = vmul.f32 %v1594, %v1610
    %vm1613 = vcmask 261127
    %1614 = vst.msk [vmem:[#allocation4 - $0x7] sm:$0x80] %vm1613, %v1536
    %vm1615 = vcmask 253952
    %1616 = vst.msk [vmem:[#allocation4 + $0x1] sm:$0x1] %vm1615, %v1538
    %v1619 = vrot.slane %v1519, 7
    %1620 = vrot.lane.b32.xlu0 %v1518, 96
    %v1621 = vpop.permute.xlu0 %1620
    %1622 = vrot.lane.b32.xlu0 %v1619, 96
    %v1623 = vpop.permute.xlu0 %1622
    %1626 = vst.msk [vmem:[#allocation6 - $0x7] sm:$0x80] %vm1613, %v1621
    %1627 = vst.msk [vmem:[#allocation6 + $0x1] sm:$0x1] %vm1615, %v1623
    %1629 = vrot.lane.b32.xlu0 %v1612, 64
    %v1630 = vpop.permute.xlu0 %1629
    %s1632 = scalar_lea.vmem [#allocation4], 2
    %vm1633 = vcmask 254976
    %1634 = vst.msk [vmem:[%s1632] sm:$0x3] %vm1633, %v1630
    %1636 = vrot.lane.b32.xlu0 %v1606, 96
    %v1637 = vpop.permute.xlu0 %1636
    %s1639 = scalar_lea.vmem [#allocation6], 2
    %1640 = vst.msk [vmem:[%s1639] sm:$0x3] %vm1633, %v1637
    %v1641 = vrot.slane %v290, 1
    %v1643 = vrot.slane %v473, 1
    %v1644 = vrot.slane %v661, 1
    %v1645 = vrot.slane %v850, 1
    %v1646 = vrot.slane %v1039, 1
    %v1647 = vrot.slane %v1228, 1
    %v1648 = vrot.slane %v1612, 1
    %v1649 = vperm.slane %v473, 0
    %v1650 = vperm.slane %v1643, 0
    %v1653 = vperm.slane %v661, 0
    %v1654 = vperm.slane %v1644, 0
    %v1657 = vperm.slane %v850, 0
    %v1658 = vperm.slane %v1645, 0
    %v1661 = vperm.slane %v1039, 0
    %v1662 = vperm.slane %v1646, 0
    %v1665 = vperm.slane %v1228, 0
    %v1666 = vperm.slane %v1647, 0
    %v1669 = vperm.slane %v1417, 0
    %v1670 = vperm.slane %v1542, 0
    %v1673 = vperm.slane %v1612, 0
    %v1674 = vperm.slane %v1648, 0
    %v1677 = vsel %vm1550, %v290, %v1649
    %v1678 = vsel %vm1550, %v1641, %v1650
    %vm1679 = vcmask 1041408
    %v1680 = vsel %vm1679, %v1677, %v1653
    %v1681 = vsel %vm1679, %v1678, %v1654
    %vm1682 = vcmask 1042432
    %v1683 = vsel %vm1682, %v1680, %v1657
    %v1684 = vsel %vm1682, %v1681, %v1658
    %vm1685 = vcmask 1043456
    %v1686 = vsel %vm1685, %v1683, %v1661
    %v1687 = vsel %vm1685, %v1684, %v1662
    %vm1688 = vcmask 1044480
    %v1689 = vsel %vm1688, %v1686, %v1665
    %v1690 = vsel %vm1688, %v1687, %v1666
    %vm1691 = vcmask 1045504
    %v1692 = vsel %vm1691, %v1689, %v1669
    %v1693 = vsel %vm1691, %v1690, %v1670
    %vm1694 = vcmask 1046528
    %v1695 = vsel %vm1694, %v1692, %v1673
    %v1696 = vsel %vm1694, %v1693, %v1674
    %v1697 = vld [vmem:[%s8] sm:$0xff]
    %v1698 = vld [vmem:[%s8 + $0x8] sm:$0xff]
    %v1699 = vld [vmem:[%s8 + $0x10] sm:$0xff]
    %v1700 = vld [vmem:[%s8 + $0x18] sm:$0xff]
    %v1701 = vld [vmem:[%s9] sm:$0x1]
    %v1703 = vperm.slane %v1701, 0
    %1707 = vrot.lane.b32.xlu0 %v1695, 64
    %v1708 = vpop.permute.xlu0 %1707
    %1709 = vrot.lane.b32.xlu0 %v1696, 64
    %v1710 = vpop.permute.xlu0 %1709
    %v1711 = vsel %vm63, %v1708, 0
    %v1713 = vsel %vm63, %v1710, 0
    %1715 = vmatpush.msra.mxu0 0.0
    %1716 = vmatpush.msra.mxu0 0.0
    %1717 = vmatpush.msra.mxu0 0.0
    %1718 = vmatpush.msra.mxu0 0.0
    %1719 = vmatpush.msra.mxu0 0.0
    %1720 = vmatpush.msra.mxu0 0.0
    %1721 = vmatpush.msra.mxu0 0.0
    %1722 = vmatpush.msra.mxu0 0.0
    %1723 = vmatpush.msra.mxu0 0.0
    %1724 = vmatpush.msra.mxu0 0.0
    %1725 = vmatpush.msra.mxu0 0.0
    %1726 = vmatpush.msra.mxu0 0.0
    %1727 = vmatpush.msra.mxu0 %v1700
    %1728 = vmatpush.msra.mxu0 %v1699
    %1729 = vmatpush.msra.mxu0 %v1698
    %1730 = vmatpush.msra.mxu0 %v1697
    %1731 = vmatmul.f32.gmra.mxu0 %v1711
    %v1732 = vpop.f32.mrf.mxu0
    %v1733 = vadd.f32 %v1703, %v1732
    %1734 = vmatmul.f32.gmra.mxu0 %v1713
    %v1735 = vpop.f32.mrf.mxu0
    %v1736 = vadd.f32 %v1703, %v1735
    %1737 = vdwg.mxu0
    %1738 = vst.msk [vmem:[#allocation2] sm:$0xff] %vm226, %v1733
    %1739 = vst.msk [vmem:[#allocation2 + $0x8] sm:$0xff] %vm226, %v1736
    // Predicated region
    $region42: #{forward.1} parent=1 // pred_check
      _
    $region43: #{forward.1} parent=1 // pred_check_branch
      %1741 = sbr.rel (0) target = $region45
    $region44: #{forward.1} parent=1 // pred_region
      %1743 = vsyncadd [#allocation3], 0
      %s1744 = sshll.u32 [#allocation2], 4
      %s1745 = int_to_ptr.vmem [resolvable:$true] %s1744
      %s1746 = sshll.u32 %s10, 4
      %s1747 = int_to_ptr.hbm [resolvable:$true] %s1746
      %1752 = dma.vmem_to_hbm [thread:$0]  %s1745, 256, %s1747, [#allocation3], 128, 128, 8
    $region45: #{forward.1} parent=1 // pred_fallthru
      _
    // Predicated region
    $region46: #{forward.1} parent=1 // pred_check
      _
    $region47: #{forward.1} parent=1 // pred_check_branch
      %1754 = sbr.rel (0) target = $region49
    $region48: #{forward.1} parent=1 // pred_region
      %1756 = vsyncadd [#allocation5], 0
      %s1757 = sshll.u32 [#allocation4], 4
      %s1758 = int_to_ptr.vmem [resolvable:$true] %s1757
      %s1759 = sshll.u32 %s11, 4
      %s1760 = int_to_ptr.hbm [resolvable:$true] %s1759
      %1765 = dma.vmem_to_hbm [thread:$0]  %s1758, 64, %s1760, [#allocation5], 32, 32, 2
    $region49: #{forward.1} parent=1 // pred_fallthru
      _
    // Predicated region
    $region50: #{forward.1} parent=1 // pred_check
      _
    $region51: #{forward.1} parent=1 // pred_check_branch
      %1767 = sbr.rel (0) target = $region53
    $region52: #{forward.1} parent=1 // pred_region
      %1769 = vsyncadd [#allocation5], 0
      %s1770 = sshll.u32 [#allocation6], 4
      %s1771 = int_to_ptr.vmem [resolvable:$true] %s1770
      %s1772 = sshll.u32 %s12, 4
      %s1773 = int_to_ptr.hbm [resolvable:$true] %s1772
      %1778 = dma.vmem_to_hbm [thread:$0]  %s1771, 64, %s1773, [#allocation5], 32, 32, 2
    $region53: #{forward.1} parent=1 // pred_fallthru
      _
    // Predicated region
    $region54: #{forward.1} parent=1 // pred_check
      _
    $region55: #{forward.1} parent=1 // pred_check_branch
      %1780 = sbr.rel (0) target = $region57
    $region56: #{forward.1} parent=1 // pred_region
      %1782 = dma.done [#allocation3], 256
    $region57: #{forward.1} parent=1 // pred_fallthru
      _
    // Predicated region
    $region58: #{forward.1} parent=1 // pred_check
      _
    $region59: #{forward.1} parent=1 // pred_check_branch
      %1784 = sbr.rel (0) target = $region61
    $region60: #{forward.1} parent=1 // pred_region
      %1786 = dma.done [#allocation5], 64
    $region61: #{forward.1} parent=1 // pred_fallthru
      _
    // Predicated region
    $region62: #{forward.1} parent=1 // pred_check
      _
    $region63: #{forward.1} parent=1 // pred_check_branch
      %1788 = sbr.rel (0) target = $region65
    $region64: #{forward.1} parent=1 // pred_region
      %1790 = dma.done [#allocation5], 64
    $region65: #{forward.1} parent=1 // pred_fallthru
      _
    %1791 = vsyncpa [#allocation3], 1
    %1792 = vsyncpa [#allocation5], 1

</llo_original>
